<compile_context>
chip_gen: v6e
topology: v6e:2x2x1
jax: 0.10.0
libtpu: 0.0.40
codegen_flags: <defaults>
</compile_context>

<pallas_src>
import functools
import math

import jax
import jax.numpy as jnp
from jax.experimental import pallas as pl
from jax.experimental.pallas import tpu as pltpu

_SQRT_HALF = 1.0 / math.sqrt(2.0)
_SQRT_2_OVER_PI = math.sqrt(2.0 / math.pi)


def _gelu_erf(x):
    # Exact erf-based GELU — matches torch.nn.GELU() default. VPU polynomial.
    return 0.5 * x * (1.0 + jax.lax.erf(x * _SQRT_HALF))


def _gelu_tanh(x):
    # tanh-approximate GELU — polynomial on VPU, transcendental on EUP.
    return 0.5 * x * (1.0 + jnp.tanh(_SQRT_2_OVER_PI * (x + 0.044715 * x * x * x)))


def _round_up(n, m):
    return ((n + m - 1) // m) * m


def _cdiv(a, b):
    return -(-a // b)


def _fused_mlp_kernel(
    value_col,              # static: lane index holding the (pre-tanh) value
    approx_gelu,            # static: GELU flavor
    x_ref,
    w0_ref, b0_ref, w1_ref, b1_ref, w2_ref, b2_ref,   # backbone
    wh_ref, bh_ref,                                   # fused head input proj
    wo_ref, bo_ref,                                   # fused policy+value output proj
    out_ref,                                          # packed (TB, out_width) output
):
    act = _gelu_tanh if approx_gelu else _gelu_erf
    cdt = w0_ref.dtype   # MXU input dtype (bf16 or f32)
    adt = b0_ref.dtype   # elementwise / activation dtype

    x = x_ref[...].astype(cdt)

    # Backbone: Linear -> GELU (x3).  f32 MXU accumulation, elementwise in adt.
    h = act(jnp.dot(x, w0_ref[...],
                    preferred_element_type=jnp.float32).astype(adt) + b0_ref[...])
    h = act(jnp.dot(h.astype(cdt), w1_ref[...],
                    preferred_element_type=jnp.float32).astype(adt) + b1_ref[...])
    h = act(jnp.dot(h.astype(cdt), w2_ref[...],
                    preferred_element_type=jnp.float32).astype(adt) + b2_ref[...])

    # Fused head input projection: [pw0 | vw0] in one MXU pass + one GELU pass.
    hv = act(jnp.dot(h.astype(cdt), wh_ref[...],
                     preferred_element_type=jnp.float32).astype(adt) + bh_ref[...])

    # Fused output projection: policy logits in lanes [:num_actions], the
    # value's pre-activation in lane `value_col` (a padding lane otherwise).
    z = jnp.dot(hv.astype(cdt), wo_ref[...],
                preferred_element_type=jnp.float32) + bo_ref[...]

    # tanh only matters on the value lane; lane-masked select keeps the store
    # a single lane-dense slab.
    lane = jax.lax.broadcasted_iota(jnp.int32, z.shape, 1)
    out_ref[...] = jnp.where(lane == value_col, jnp.tanh(z), z)


def init_params(key, obs_shape, num_actions, hidden_sizes=(512, 256, 256)):
    """He (kaiming_normal_, fan_in, nonlinearity='relu') init, zero biases."""
    h0, h1, h2 = hidden_sizes
    dims = {
        "w0": (obs_shape, h0),
        "w1": (h0, h1),
        "w2": (h1, h2),
        "pw0": (h2, h2),
        "pw1": (h2, num_actions),
        "vw0": (h2, h2 // 2),
        "vw1": (h2 // 2, 1),
    }
    params = {}
    keys = jax.random.split(key, len(dims))
    for k, (wname, (fin, fout)) in zip(keys, dims.items()):
        std = math.sqrt(2.0 / fin)  # gain(relu)=sqrt(2), mode=fan_in
        params[wname] = std * jax.random.normal(k, (fin, fout), dtype=jnp.float32)
        # biases kept 2D (1, out) so they broadcast cleanly in VMEM
        params[wname.replace("w", "b", 1)] = jnp.zeros((1, fout), jnp.float32)
    return params


def simple_network_forward(
    x,
    params,
    *,
    compute_dtype=jnp.bfloat16,      # MXU input dtype (f32 for exact torch parity)
    activation_dtype=None,           # elementwise dtype; default = compute_dtype.
                                     # Set jnp.float32 on v5e (no bf16 VPU/EUP).
    approx_gelu=True,                # tanh-GELU on EUP; False = exact erf (torch)
    block_batch=2048,                # max rows per batch tile
    vmem_limit_bytes=48 * 1024 * 1024,
):
    """Returns (policy_logits [B, num_actions], value [B, 1])."""
    if activation_dtype is None:
        activation_dtype = compute_dtype
    adt = activation_dtype

    B, obs = x.shape
    h_last = params["pw0"].shape[0]          # 256
    value_h = params["vw0"].shape[1]         # 128
    num_actions = params["pw1"].shape[1]
    value_col = num_actions                  # padding lane of the packed output
    out_width = _round_up(num_actions + 1, 128)

    # ---------------- weight packing (layout plumbing, plain JAX) -----------
    # Layer 0: pad obs (K) dim to a lane-dense multiple of 128.
    obs_p = _round_up(obs, 128)
    w0 = params["w0"]
    if obs_p != obs:
        w0 = jnp.pad(w0, ((0, obs_p - obs), (0, 0)))
    w0 = w0.astype(compute_dtype)
    w1 = params["w1"].astype(compute_dtype)
    w2 = params["w2"].astype(compute_dtype)
    b0 = params["b0"].astype(adt)
    b1 = params["b1"].astype(adt)
    b2 = params["b2"].astype(adt)

    # Fused head input projection: (h_last, h_last + value_h) = (256, 384).
    wh = jnp.concatenate([params["pw0"], params["vw0"]], axis=1).astype(compute_dtype)
    bh = jnp.concatenate([params["pb0"], params["vb0"]], axis=1).astype(adt)

    # Fused output projection: rows 0:h_last carry pw1 into lanes [:num_actions],
    # rows h_last: carry vw1 into lane value_col. Bias packed the same way.
    head_in = h_last + value_h
    wo = jnp.zeros((head_in, out_width), jnp.float32)
    wo = wo.at[:h_last, :num_actions].set(params["pw1"])
    wo = wo.at[h_last:, value_col].set(params["vw1"][:, 0])
    wo = wo.astype(compute_dtype)
    bo = jnp.zeros((1, out_width), jnp.float32)
    bo = bo.at[:, :num_actions].set(params["pb1"])
    bo = bo.at[0, value_col].set(params["vb1"][0, 0])

    weights = (w0, b0, w1, b1, w2, b2, wh, bh, wo, bo)

    # ---------------- batch tiling + grid ------------------------------------
    # Balanced tiles; force >=2 tiles so v7x's two TensorCores both get work
    # (collapses back to 1 tile only when B <= 8).
    n_tiles = max(2, _cdiv(B, block_batch))
    tb = _round_up(_cdiv(B, n_tiles), 8)
    b_pad = _round_up(B, tb)
    pad_rows = b_pad - B
    pad_cols = obs_p - obs
    if pad_rows or pad_cols:
        x = jnp.pad(x, ((0, pad_rows), (0, pad_cols)))
    grid = (b_pad // tb,)

    x_spec = pl.BlockSpec((tb, obs_p), lambda i: (i, 0))
    weight_specs = [pl.BlockSpec(w.shape, lambda i: (0, 0)) for w in weights]
    out_spec = pl.BlockSpec((tb, out_width), lambda i: (i, 0))

    out = pl.pallas_call(
        functools.partial(_fused_mlp_kernel, value_col, approx_gelu),
        out_shape=jax.ShapeDtypeStruct((b_pad, out_width), jnp.float32),
        grid=grid,
        in_specs=[x_spec] + weight_specs,
        out_specs=out_spec,
        compiler_params=pltpu.CompilerParams(
            dimension_semantics=("parallel",),   # shards across v7x's 2 TCs
            vmem_limit_bytes=vmem_limit_bytes,
        ),
    )(x, *weights)

    policy = out[:B, :num_actions]
    value = out[:B, value_col:value_col + 1]
    return policy, value


def _reference_forward(x, params, *, compute_dtype, activation_dtype, approx_gelu):
    """Pure-JAX reference mirroring the kernel's numerics choices."""
    act = _gelu_tanh if approx_gelu else _gelu_erf
    adt = activation_dtype

    def dot(a, w):
        return jnp.dot(a.astype(compute_dtype), w.astype(compute_dtype),
                       preferred_element_type=jnp.float32)

    def layer(a, w, b):
        return act(dot(a, w).astype(adt) + b.astype(adt))

    h = layer(x, params["w0"], params["b0"])
    h = layer(h, params["w1"], params["b1"])
    h = layer(h, params["w2"], params["b2"])
    p = layer(h, params["pw0"], params["pb0"])
    v = layer(h, params["vw0"], params["vb0"])
    policy = dot(p, params["pw1"]) + params["pb1"]
    value = jnp.tanh(dot(v, params["vw1"]) + params["vb1"])
    return policy, value


if __name__ == "__main__":
    BATCH = 2
    OBS_SHAPE = 32
    NUM_ACTIONS = 16
    HIDDEN_SIZES = (512, 256, 256)  # module defaults

    key = jax.random.PRNGKey(0)
    pkey, xkey = jax.random.split(key)

    params = init_params(pkey, OBS_SHAPE, NUM_ACTIONS, HIDDEN_SIZES)
    x = jax.random.normal(xkey, (BATCH, OBS_SHAPE), dtype=jnp.float32)

    # Default fast path: bf16 MXU inputs + bf16 elementwise + tanh-approx GELU.
    policy, value = simple_network_forward(x, params)
    jax.block_until_ready((policy, value))
    assert policy.shape == (BATCH, NUM_ACTIONS)
    assert value.shape == (BATCH, 1)
    ref_p, ref_v = _reference_forward(
        x, params, compute_dtype=jnp.bfloat16,
        activation_dtype=jnp.bfloat16, approx_gelu=True)
    assert jnp.allclose(policy, ref_p, atol=1e-1, rtol=1e-1)
    assert jnp.allclose(value, ref_v, atol=1e-1, rtol=1e-1)

    # Exact torch-parity path: f32 MXU inputs + exact erf GELU (torch.nn.GELU()).
    policy_f32, value_f32 = simple_network_forward(
        x, params, compute_dtype=jnp.float32, approx_gelu=False)
    jax.block_until_ready((policy_f32, value_f32))
    ref_pf, ref_vf = _reference_forward(
        x, params, compute_dtype=jnp.float32,
        activation_dtype=jnp.float32, approx_gelu=False)
    assert jnp.allclose(policy_f32, ref_pf, atol=2e-4, rtol=2e-4)
    assert jnp.allclose(value_f32, ref_vf, atol=2e-4, rtol=2e-4)

    print("KERNEL_OK")
</pallas_src>

<mosaic_0001>
module attributes {stable_mosaic.version = 11 : i64} {
  func.func @_fused_mlp_kernel(%arg0: i32, %arg1: memref<8x128xf32, #tpu.memory_space<vmem>>, %arg2: memref<128x512xbf16, #tpu.memory_space<vmem>>, %arg3: memref<1x512xbf16, #tpu.memory_space<vmem>>, %arg4: memref<512x256xbf16, #tpu.memory_space<vmem>>, %arg5: memref<1x256xbf16, #tpu.memory_space<vmem>>, %arg6: memref<256x256xbf16, #tpu.memory_space<vmem>>, %arg7: memref<1x256xbf16, #tpu.memory_space<vmem>>, %arg8: memref<256x384xbf16, #tpu.memory_space<vmem>>, %arg9: memref<1x384xbf16, #tpu.memory_space<vmem>>, %arg10: memref<384x128xbf16, #tpu.memory_space<vmem>>, %arg11: memref<1x128xf32, #tpu.memory_space<vmem>>, %arg12: memref<8x128xf32, #tpu.memory_space<vmem>>) attributes {dimension_semantics = [#tpu.dimension_semantics<parallel>], iteration_bounds = array<i64: 1>, scalar_prefetch = 0 : i64, scratch_operands = 0 : i64, tpu.core_type = #tpu.core_type<tc>, window_params = [{transform_indices = @transform_0, window_bounds = array<i64: 8, 128>}, {pipeline_mode = #tpu.pipeline_mode<synchronous>, transform_indices = @transform_1, window_bounds = array<i64: 128, 512>}, {pipeline_mode = #tpu.pipeline_mode<synchronous>, transform_indices = @transform_2, window_bounds = array<i64: 1, 512>}, {pipeline_mode = #tpu.pipeline_mode<synchronous>, transform_indices = @transform_3, window_bounds = array<i64: 512, 256>}, {pipeline_mode = #tpu.pipeline_mode<synchronous>, transform_indices = @transform_4, window_bounds = array<i64: 1, 256>}, {pipeline_mode = #tpu.pipeline_mode<synchronous>, transform_indices = @transform_5, window_bounds = array<i64: 256, 256>}, {pipeline_mode = #tpu.pipeline_mode<synchronous>, transform_indices = @transform_6, window_bounds = array<i64: 1, 256>}, {pipeline_mode = #tpu.pipeline_mode<synchronous>, transform_indices = @transform_7, window_bounds = array<i64: 256, 384>}, {pipeline_mode = #tpu.pipeline_mode<synchronous>, transform_indices = @transform_8, window_bounds = array<i64: 1, 384>}, {pipeline_mode = #tpu.pipeline_mode<synchronous>, transform_indices = @transform_9, window_bounds = array<i64: 384, 128>}, {pipeline_mode = #tpu.pipeline_mode<synchronous>, transform_indices = @transform_10, window_bounds = array<i64: 1, 128>}, {transform_indices = @transform_11, window_bounds = array<i64: 8, 128>}]} {
    %c0 = arith.constant 0 : index
    %c0_0 = arith.constant 0 : index
    %0 = vector.load %arg1[%c0, %c0_0] : memref<8x128xf32, #tpu.memory_space<vmem>>, vector<8x128xf32>
    %1 = arith.truncf %0 : vector<8x128xf32> to vector<8x128xbf16>
    %c0_1 = arith.constant 0 : index
    %c0_2 = arith.constant 0 : index
    %2 = vector.load %arg2[%c0_1, %c0_2] : memref<128x512xbf16, #tpu.memory_space<vmem>>, vector<128x512xbf16>
    %cst = arith.constant dense<0.000000e+00> : vector<8x512xf32>
    %3 = tpu.matmul %1, %2, %cst {dimension_numbers = #tpu.dot_dimension_numbers<[1], [0], [0], [1], [0, 0, 1, 1], [], []>} : vector<8x128xbf16>, vector<128x512xbf16>, vector<8x512xf32> -> vector<8x512xf32>
    %4 = arith.truncf %3 : vector<8x512xf32> to vector<8x512xbf16>
    %c0_3 = arith.constant 0 : index
    %c0_4 = arith.constant 0 : index
    %5 = vector.load %arg3[%c0_3, %c0_4] : memref<1x512xbf16, #tpu.memory_space<vmem>>, vector<1x512xbf16>
    %6 = vector.broadcast %5 : vector<1x512xbf16> to vector<8x512xbf16>
    %7 = arith.addf %4, %6 : vector<8x512xbf16>
    %cst_5 = arith.constant 5.000000e-01 : bf16
    %8 = vector.broadcast %cst_5 : bf16 to vector<8x512xbf16>
    %9 = arith.mulf %8, %7 : vector<8x512xbf16>
    %cst_6 = arith.constant 4.467770e-02 : bf16
    %10 = vector.broadcast %cst_6 : bf16 to vector<8x512xbf16>
    %11 = arith.mulf %10, %7 : vector<8x512xbf16>
    %12 = arith.mulf %11, %7 : vector<8x512xbf16>
    %13 = arith.mulf %12, %7 : vector<8x512xbf16>
    %14 = arith.addf %7, %13 : vector<8x512xbf16>
    %cst_7 = arith.constant 7.968750e-01 : bf16
    %15 = vector.broadcast %cst_7 : bf16 to vector<8x512xbf16>
    %16 = arith.mulf %15, %14 : vector<8x512xbf16>
    %17 = math.tanh %16 : vector<8x512xbf16>
    %cst_8 = arith.constant 1.000000e+00 : bf16
    %18 = vector.broadcast %cst_8 : bf16 to vector<8x512xbf16>
    %19 = arith.addf %18, %17 : vector<8x512xbf16>
    %20 = arith.mulf %9, %19 : vector<8x512xbf16>
    %c0_9 = arith.constant 0 : index
    %c0_10 = arith.constant 0 : index
    %21 = vector.load %arg4[%c0_9, %c0_10] : memref<512x256xbf16, #tpu.memory_space<vmem>>, vector<512x256xbf16>
    %cst_11 = arith.constant dense<0.000000e+00> : vector<8x256xf32>
    %22 = tpu.matmul %20, %21, %cst_11 {dimension_numbers = #tpu.dot_dimension_numbers<[1], [0], [0], [1], [0, 0, 1, 1], [], []>} : vector<8x512xbf16>, vector<512x256xbf16>, vector<8x256xf32> -> vector<8x256xf32>
    %23 = arith.truncf %22 : vector<8x256xf32> to vector<8x256xbf16>
    %c0_12 = arith.constant 0 : index
    %c0_13 = arith.constant 0 : index
    %24 = vector.load %arg5[%c0_12, %c0_13] : memref<1x256xbf16, #tpu.memory_space<vmem>>, vector<1x256xbf16>
    %25 = vector.broadcast %24 : vector<1x256xbf16> to vector<8x256xbf16>
    %26 = arith.addf %23, %25 : vector<8x256xbf16>
    %cst_14 = arith.constant 5.000000e-01 : bf16
    %27 = vector.broadcast %cst_14 : bf16 to vector<8x256xbf16>
    %28 = arith.mulf %27, %26 : vector<8x256xbf16>
    %cst_15 = arith.constant 4.467770e-02 : bf16
    %29 = vector.broadcast %cst_15 : bf16 to vector<8x256xbf16>
    %30 = arith.mulf %29, %26 : vector<8x256xbf16>
    %31 = arith.mulf %30, %26 : vector<8x256xbf16>
    %32 = arith.mulf %31, %26 : vector<8x256xbf16>
    %33 = arith.addf %26, %32 : vector<8x256xbf16>
    %cst_16 = arith.constant 7.968750e-01 : bf16
    %34 = vector.broadcast %cst_16 : bf16 to vector<8x256xbf16>
    %35 = arith.mulf %34, %33 : vector<8x256xbf16>
    %36 = math.tanh %35 : vector<8x256xbf16>
    %cst_17 = arith.constant 1.000000e+00 : bf16
    %37 = vector.broadcast %cst_17 : bf16 to vector<8x256xbf16>
    %38 = arith.addf %37, %36 : vector<8x256xbf16>
    %39 = arith.mulf %28, %38 : vector<8x256xbf16>
    %c0_18 = arith.constant 0 : index
    %c0_19 = arith.constant 0 : index
    %40 = vector.load %arg6[%c0_18, %c0_19] : memref<256x256xbf16, #tpu.memory_space<vmem>>, vector<256x256xbf16>
    %cst_20 = arith.constant dense<0.000000e+00> : vector<8x256xf32>
    %41 = tpu.matmul %39, %40, %cst_20 {dimension_numbers = #tpu.dot_dimension_numbers<[1], [0], [0], [1], [0, 0, 1, 1], [], []>} : vector<8x256xbf16>, vector<256x256xbf16>, vector<8x256xf32> -> vector<8x256xf32>
    %42 = arith.truncf %41 : vector<8x256xf32> to vector<8x256xbf16>
    %c0_21 = arith.constant 0 : index
    %c0_22 = arith.constant 0 : index
    %43 = vector.load %arg7[%c0_21, %c0_22] : memref<1x256xbf16, #tpu.memory_space<vmem>>, vector<1x256xbf16>
    %44 = vector.broadcast %43 : vector<1x256xbf16> to vector<8x256xbf16>
    %45 = arith.addf %42, %44 : vector<8x256xbf16>
    %cst_23 = arith.constant 5.000000e-01 : bf16
    %46 = vector.broadcast %cst_23 : bf16 to vector<8x256xbf16>
    %47 = arith.mulf %46, %45 : vector<8x256xbf16>
    %cst_24 = arith.constant 4.467770e-02 : bf16
    %48 = vector.broadcast %cst_24 : bf16 to vector<8x256xbf16>
    %49 = arith.mulf %48, %45 : vector<8x256xbf16>
    %50 = arith.mulf %49, %45 : vector<8x256xbf16>
    %51 = arith.mulf %50, %45 : vector<8x256xbf16>
    %52 = arith.addf %45, %51 : vector<8x256xbf16>
    %cst_25 = arith.constant 7.968750e-01 : bf16
    %53 = vector.broadcast %cst_25 : bf16 to vector<8x256xbf16>
    %54 = arith.mulf %53, %52 : vector<8x256xbf16>
    %55 = math.tanh %54 : vector<8x256xbf16>
    %cst_26 = arith.constant 1.000000e+00 : bf16
    %56 = vector.broadcast %cst_26 : bf16 to vector<8x256xbf16>
    %57 = arith.addf %56, %55 : vector<8x256xbf16>
    %58 = arith.mulf %47, %57 : vector<8x256xbf16>
    %c0_27 = arith.constant 0 : index
    %c0_28 = arith.constant 0 : index
    %59 = vector.load %arg8[%c0_27, %c0_28] : memref<256x384xbf16, #tpu.memory_space<vmem>>, vector<256x384xbf16>
    %cst_29 = arith.constant dense<0.000000e+00> : vector<8x384xf32>
    %60 = tpu.matmul %58, %59, %cst_29 {dimension_numbers = #tpu.dot_dimension_numbers<[1], [0], [0], [1], [0, 0, 1, 1], [], []>} : vector<8x256xbf16>, vector<256x384xbf16>, vector<8x384xf32> -> vector<8x384xf32>
    %61 = arith.truncf %60 : vector<8x384xf32> to vector<8x384xbf16>
    %c0_30 = arith.constant 0 : index
    %c0_31 = arith.constant 0 : index
    %62 = vector.load %arg9[%c0_30, %c0_31] : memref<1x384xbf16, #tpu.memory_space<vmem>>, vector<1x384xbf16>
    %63 = vector.broadcast %62 : vector<1x384xbf16> to vector<8x384xbf16>
    %64 = arith.addf %61, %63 : vector<8x384xbf16>
    %cst_32 = arith.constant 5.000000e-01 : bf16
    %65 = vector.broadcast %cst_32 : bf16 to vector<8x384xbf16>
    %66 = arith.mulf %65, %64 : vector<8x384xbf16>
    %cst_33 = arith.constant 4.467770e-02 : bf16
    %67 = vector.broadcast %cst_33 : bf16 to vector<8x384xbf16>
    %68 = arith.mulf %67, %64 : vector<8x384xbf16>
    %69 = arith.mulf %68, %64 : vector<8x384xbf16>
    %70 = arith.mulf %69, %64 : vector<8x384xbf16>
    %71 = arith.addf %64, %70 : vector<8x384xbf16>
    %cst_34 = arith.constant 7.968750e-01 : bf16
    %72 = vector.broadcast %cst_34 : bf16 to vector<8x384xbf16>
    %73 = arith.mulf %72, %71 : vector<8x384xbf16>
    %74 = math.tanh %73 : vector<8x384xbf16>
    %cst_35 = arith.constant 1.000000e+00 : bf16
    %75 = vector.broadcast %cst_35 : bf16 to vector<8x384xbf16>
    %76 = arith.addf %75, %74 : vector<8x384xbf16>
    %77 = arith.mulf %66, %76 : vector<8x384xbf16>
    %c0_36 = arith.constant 0 : index
    %c0_37 = arith.constant 0 : index
    %78 = vector.load %arg10[%c0_36, %c0_37] : memref<384x128xbf16, #tpu.memory_space<vmem>>, vector<384x128xbf16>
    %cst_38 = arith.constant dense<0.000000e+00> : vector<8x128xf32>
    %79 = tpu.matmul %77, %78, %cst_38 {dimension_numbers = #tpu.dot_dimension_numbers<[1], [0], [0], [1], [0, 0, 1, 1], [], []>} : vector<8x384xbf16>, vector<384x128xbf16>, vector<8x128xf32> -> vector<8x128xf32>
    %c0_39 = arith.constant 0 : index
    %c0_40 = arith.constant 0 : index
    %80 = vector.load %arg11[%c0_39, %c0_40] : memref<1x128xf32, #tpu.memory_space<vmem>>, vector<1x128xf32>
    %81 = vector.broadcast %80 : vector<1x128xf32> to vector<8x128xf32>
    %82 = arith.addf %79, %81 : vector<8x128xf32>
    %83 = tpu.iota {dimensions = array<i32: 1>} : vector<8x128xi32>
    %c16_i32 = arith.constant 16 : i32
    %84 = vector.broadcast %c16_i32 : i32 to vector<8x128xi32>
    %85 = arith.cmpi eq, %83, %84 : vector<8x128xi32>
    %86 = math.tanh %82 : vector<8x128xf32>
    %87 = arith.select %85, %86, %82 : vector<8x128xi1>, vector<8x128xf32>
    %c0_41 = arith.constant 0 : index
    %c0_42 = arith.constant 0 : index
    %88 = vector.load %arg12[%c0_41, %c0_42] : memref<8x128xf32, #tpu.memory_space<vmem>>, vector<8x128xf32>
    tpu.vector_store %arg12[%c0_41, %c0_42], %87 {strides = array<i32>} : memref<8x128xf32, #tpu.memory_space<vmem>>, vector<8x128xf32>,
    return
  }
  func.func @transform_0(%arg0: i32) -> (i32, i32) {
    %c0_i32 = arith.constant 0 : i32
    %c0_i32_0 = arith.constant 0 : i32
    return %arg0, %c0_i32 : i32, i32
  }
  func.func @transform_1(%arg0: i32) -> (i32, i32) {
    %c0_i32 = arith.constant 0 : i32
    %c0_i32_0 = arith.constant 0 : i32
    %c0_i32_1 = arith.constant 0 : i32
    return %c0_i32, %c0_i32_0 : i32, i32
  }
  func.func @transform_2(%arg0: i32) -> (i32, i32) {
    %c0_i32 = arith.constant 0 : i32
    %c0_i32_0 = arith.constant 0 : i32
    %c0_i32_1 = arith.constant 0 : i32
    return %c0_i32, %c0_i32_0 : i32, i32
  }
  func.func @transform_3(%arg0: i32) -> (i32, i32) {
    %c0_i32 = arith.constant 0 : i32
    %c0_i32_0 = arith.constant 0 : i32
    %c0_i32_1 = arith.constant 0 : i32
    return %c0_i32, %c0_i32_0 : i32, i32
  }
  func.func @transform_4(%arg0: i32) -> (i32, i32) {
    %c0_i32 = arith.constant 0 : i32
    %c0_i32_0 = arith.constant 0 : i32
    %c0_i32_1 = arith.constant 0 : i32
    return %c0_i32, %c0_i32_0 : i32, i32
  }
  func.func @transform_5(%arg0: i32) -> (i32, i32) {
    %c0_i32 = arith.constant 0 : i32
    %c0_i32_0 = arith.constant 0 : i32
    %c0_i32_1 = arith.constant 0 : i32
    return %c0_i32, %c0_i32_0 : i32, i32
  }
  func.func @transform_6(%arg0: i32) -> (i32, i32) {
    %c0_i32 = arith.constant 0 : i32
    %c0_i32_0 = arith.constant 0 : i32
    %c0_i32_1 = arith.constant 0 : i32
    return %c0_i32, %c0_i32_0 : i32, i32
  }
  func.func @transform_7(%arg0: i32) -> (i32, i32) {
    %c0_i32 = arith.constant 0 : i32
    %c0_i32_0 = arith.constant 0 : i32
    %c0_i32_1 = arith.constant 0 : i32
    return %c0_i32, %c0_i32_0 : i32, i32
  }
  func.func @transform_8(%arg0: i32) -> (i32, i32) {
    %c0_i32 = arith.constant 0 : i32
    %c0_i32_0 = arith.constant 0 : i32
    %c0_i32_1 = arith.constant 0 : i32
    return %c0_i32, %c0_i32_0 : i32, i32
  }
  func.func @transform_9(%arg0: i32) -> (i32, i32) {
    %c0_i32 = arith.constant 0 : i32
    %c0_i32_0 = arith.constant 0 : i32
    %c0_i32_1 = arith.constant 0 : i32
    return %c0_i32, %c0_i32_0 : i32, i32
  }
  func.func @transform_10(%arg0: i32) -> (i32, i32) {
    %c0_i32 = arith.constant 0 : i32
    %c0_i32_0 = arith.constant 0 : i32
    %c0_i32_1 = arith.constant 0 : i32
    return %c0_i32, %c0_i32_0 : i32, i32
  }
  func.func @transform_11(%arg0: i32) -> (i32, i32) {
    %c0_i32 = arith.constant 0 : i32
    %c0_i32_0 = arith.constant 0 : i32
    return %arg0, %c0_i32 : i32, i32
  }
}

</mosaic_0001>

<llo_original>
// kernel: tpu_custom_call.1
$region0: #{tpu_custom_call.1}
  #allocation0 [shape = 'u32[]', space=smem, size = 0x4, offset = 0x4, fixed_abs, tag = 'smem constant byte address 0x4 - core index']
  #allocation1 [shape = 'u32[144,128]{1,0:T(1,128)}', space=vmem, size = 0x12000, scoped, tag = 'internal scratch']
  %s0 = inlined_call_operand.hbm [shape: f32[8,128], index: 0, kind: input, shape index: {}]
  %s1 = inlined_call_operand.hbm [shape: bf16[128,512], index: 1, kind: input, shape index: {}]
  %s2 = inlined_call_operand.hbm [shape: bf16[1,512], index: 2, kind: input, shape index: {}]
  %s3 = inlined_call_operand.hbm [shape: bf16[512,256], index: 3, kind: input, shape index: {}]
  %s4 = inlined_call_operand.vmem [shape: bf16[1,256], index: 4, kind: input, shape index: {}]
  %s5 = inlined_call_operand.hbm [shape: bf16[256,256], index: 5, kind: input, shape index: {}]
  %s6 = inlined_call_operand.vmem [shape: bf16[1,256], index: 6, kind: input, shape index: {}]
  %s7 = inlined_call_operand.hbm [shape: bf16[256,384], index: 7, kind: input, shape index: {}]
  %s8 = inlined_call_operand.vmem [shape: bf16[1,384], index: 8, kind: input, shape index: {}]
  %s9 = inlined_call_operand.hbm [shape: bf16[384,128], index: 9, kind: input, shape index: {}]
  %s10 = inlined_call_operand.vmem [shape: f32[1,128], index: 10, kind: input, shape index: {}]
  %s11 = inlined_call_operand.hbm [shape: f32[8,128], index: 11, kind: output, shape index: {}]
  %s12 = sld [smem:[#allocation0]]
  $region82: #{tpu_custom_call.1} parent=0
    _
  %s14 = ssub.s32 1, %s12
  %s15 = scalar_select 0, %s14, %s12
  $region1: #{tpu_custom_call.1} parent=0
    #allocation2 [shape = 'u8[4096]{0}', space=vmem, size = 0x1000, scoped, tag = 'input window, operand 0, single buffered']
    #allocation3 [shape = 's32[1]{0}', space=sflag, size = 0x4, scoped, tag = 'scoped memory for tpu_custom_call.1']
    #allocation4 [shape = 's32[1]{0}', space=sflag, size = 0x4, scoped, tag = 'scoped memory for tpu_custom_call.1']
    #allocation5 [shape = 'u8[131072]{0}', space=vmem, size = 0x20000, scoped, tag = 'input window, operand 1, single buffered']
    #allocation6 [shape = 's32[1]{0}', space=sflag, size = 0x4, scoped, tag = 'scoped memory for tpu_custom_call.1']
    #allocation7 [shape = 'u8[2048]{0}', space=vmem, size = 0x800, scoped, tag = 'input window, operand 2, single buffered']
    #allocation8 [shape = 'u8[262144]{0}', space=vmem, size = 0x40000, scoped, tag = 'input window, operand 3, single buffered']
    #allocation9 [shape = 's32[1]{0}', space=sflag, size = 0x4, scoped, tag = 'scoped memory for tpu_custom_call.1']
    #allocation10 [shape = 'u8[131072]{0}', space=vmem, size = 0x20000, scoped, tag = 'input window, operand 5, single buffered']
    #allocation11 [shape = 'u8[196608]{0}', space=vmem, size = 0x30000, scoped, tag = 'input window, operand 7, single buffered']
    #allocation12 [shape = 's32[1]{0}', space=sflag, size = 0x4, scoped, tag = 'scoped memory for tpu_custom_call.1']
    #allocation13 [shape = 'u8[98304]{0}', space=vmem, size = 0x18000, scoped, tag = 'input window, operand 9, single buffered']
    #allocation14 [shape = 'u8[4096]{0}', space=vmem, size = 0x1000, scoped, tag = 'output window, operand 0, single buffered']
    %16 = vsyncpa [#allocation3], 0
    %17 = vsyncpa [#allocation6], 0
    %18 = vsyncpa [#allocation9], 0
    %19 = vsyncpa [#allocation12], 0
    %20 = vsyncpa [#allocation4], 0
    // Predicated region
    $region2: #{tpu_custom_call.1} parent=1 // pred_check
      _
    $region3: #{tpu_custom_call.1} parent=1 // pred_check_branch
      %22 = sbr.rel (0) target = $region5
    $region4: #{tpu_custom_call.1} parent=1 // pred_region
      %s24 = ssub.s32 128, 128
      %25 = vsyncadd [#allocation3], %s24
      %s27 = sshll.u32 [#allocation2], 4
      %s28 = int_to_ptr.vmem [resolvable:$true] %s27
      %30 = dma.hbm_to_vmem [thread:$0]  %s0, 128, %s28, [#allocation3]
    $region5: #{tpu_custom_call.1} parent=1 // pred_fallthru
      _
    // Predicated region
    $region6: #{tpu_custom_call.1} parent=1 // pred_check
      _
    $region7: #{tpu_custom_call.1} parent=1 // pred_check_branch
      %32 = sbr.rel (0) target = $region9
    $region8: #{tpu_custom_call.1} parent=1 // pred_region
      %s34 = ssub.s32 4096, 4096
      %35 = vsyncadd [#allocation6], %s34
      %s36 = sshll.u32 [#allocation5], 4
      %s37 = int_to_ptr.vmem [resolvable:$true] %s36
      %42 = dma.hbm_to_vmem [thread:$0]  %s1, 4096, %s37, [#allocation6], 256, 256, 16
    $region9: #{tpu_custom_call.1} parent=1 // pred_fallthru
      _
    // Predicated region
    $region10: #{tpu_custom_call.1} parent=1 // pred_check
      _
    $region11: #{tpu_custom_call.1} parent=1 // pred_check_branch
      %44 = sbr.rel (0) target = $region13
    $region12: #{tpu_custom_call.1} parent=1 // pred_region
      %s46 = ssub.s32 64, 64
      %47 = vsyncadd [#allocation6], %s46
      %s49 = sshll.u32 [#allocation7], 4
      %s50 = int_to_ptr.vmem [resolvable:$true] %s49
      %52 = dma.hbm_to_vmem [thread:$0]  %s2, 64, %s50, [#allocation6]
    $region13: #{tpu_custom_call.1} parent=1 // pred_fallthru
      _
    // Predicated region
    $region14: #{tpu_custom_call.1} parent=1 // pred_check
      _
    $region15: #{tpu_custom_call.1} parent=1 // pred_check_branch
      %54 = sbr.rel (0) target = $region17
    $region16: #{tpu_custom_call.1} parent=1 // pred_region
      %s56 = ssub.s32 8192, 8192
      %57 = vsyncadd [#allocation9], %s56
      %s58 = sshll.u32 [#allocation8], 4
      %s59 = int_to_ptr.vmem [resolvable:$true] %s58
      %64 = dma.hbm_to_vmem [thread:$0]  %s3, 8192, %s59, [#allocation9], 128, 128, 8
    $region17: #{tpu_custom_call.1} parent=1 // pred_fallthru
      _
    // Predicated region
    $region18: #{tpu_custom_call.1} parent=1 // pred_check
      _
    $region19: #{tpu_custom_call.1} parent=1 // pred_check_branch
      %66 = sbr.rel (0) target = $region21
    $region20: #{tpu_custom_call.1} parent=1 // pred_region
      _
    $region21: #{tpu_custom_call.1} parent=1 // pred_fallthru
      _
    // Predicated region
    $region22: #{tpu_custom_call.1} parent=1 // pred_check
      _
    $region23: #{tpu_custom_call.1} parent=1 // pred_check_branch
      %68 = sbr.rel (0) target = $region25
    $region24: #{tpu_custom_call.1} parent=1 // pred_region
      %s70 = ssub.s32 4096, 4096
      %71 = vsyncadd [#allocation9], %s70
      %s72 = sshll.u32 [#allocation10], 4
      %s73 = int_to_ptr.vmem [resolvable:$true] %s72
      %78 = dma.hbm_to_vmem [thread:$0]  %s5, 4096, %s73, [#allocation9], 128, 128, 8
    $region25: #{tpu_custom_call.1} parent=1 // pred_fallthru
      _
    // Predicated region
    $region26: #{tpu_custom_call.1} parent=1 // pred_check
      _
    $region27: #{tpu_custom_call.1} parent=1 // pred_check_branch
      %80 = sbr.rel (0) target = $region29
    $region28: #{tpu_custom_call.1} parent=1 // pred_region
      _
    $region29: #{tpu_custom_call.1} parent=1 // pred_fallthru
      _
    // Predicated region
    $region30: #{tpu_custom_call.1} parent=1 // pred_check
      _
    $region31: #{tpu_custom_call.1} parent=1 // pred_check_branch
      %82 = sbr.rel (0) target = $region33
    $region32: #{tpu_custom_call.1} parent=1 // pred_region
      %s84 = ssub.s32 6144, 6144
      %85 = vsyncadd [#allocation12], %s84
      %s86 = sshll.u32 [#allocation11], 4
      %s87 = int_to_ptr.vmem [resolvable:$true] %s86
      %92 = dma.hbm_to_vmem [thread:$0]  %s7, 6144, %s87, [#allocation12], 192, 192, 12
    $region33: #{tpu_custom_call.1} parent=1 // pred_fallthru
      _
    // Predicated region
    $region34: #{tpu_custom_call.1} parent=1 // pred_check
      _
    $region35: #{tpu_custom_call.1} parent=1 // pred_check_branch
      %94 = sbr.rel (0) target = $region37
    $region36: #{tpu_custom_call.1} parent=1 // pred_region
      _
    $region37: #{tpu_custom_call.1} parent=1 // pred_fallthru
      _
    // Predicated region
    $region38: #{tpu_custom_call.1} parent=1 // pred_check
      _
    $region39: #{tpu_custom_call.1} parent=1 // pred_check_branch
      %96 = sbr.rel (0) target = $region41
    $region40: #{tpu_custom_call.1} parent=1 // pred_region
      %s98 = ssub.s32 3072, 3072
      %99 = vsyncadd [#allocation12], %s98
      %s100 = sshll.u32 [#allocation13], 4
      %s101 = int_to_ptr.vmem [resolvable:$true] %s100
      %106 = dma.hbm_to_vmem [thread:$0]  %s9, 3072, %s101, [#allocation12], 64, 64, 4
    $region41: #{tpu_custom_call.1} parent=1 // pred_fallthru
      _
    // Predicated region
    $region42: #{tpu_custom_call.1} parent=1 // pred_check
      _
    $region43: #{tpu_custom_call.1} parent=1 // pred_check_branch
      %108 = sbr.rel (0) target = $region45
    $region44: #{tpu_custom_call.1} parent=1 // pred_region
      _
    $region45: #{tpu_custom_call.1} parent=1 // pred_fallthru
      _
    // Predicated region
    $region46: #{tpu_custom_call.1} parent=1 // pred_check
      _
    $region47: #{tpu_custom_call.1} parent=1 // pred_check_branch
      %110 = sbr.rel (0) target = $region49
    $region48: #{tpu_custom_call.1} parent=1 // pred_region
      %111 = dma.done [#allocation3], 128
    $region49: #{tpu_custom_call.1} parent=1 // pred_fallthru
      _
    // Predicated region
    $region50: #{tpu_custom_call.1} parent=1 // pred_check
      _
    $region51: #{tpu_custom_call.1} parent=1 // pred_check_branch
      %113 = sbr.rel (0) target = $region53
    $region52: #{tpu_custom_call.1} parent=1 // pred_region
      %114 = dma.done [#allocation6], 4096
    $region53: #{tpu_custom_call.1} parent=1 // pred_fallthru
      _
    // Predicated region
    $region54: #{tpu_custom_call.1} parent=1 // pred_check
      _
    $region55: #{tpu_custom_call.1} parent=1 // pred_check_branch
      %116 = sbr.rel (0) target = $region57
    $region56: #{tpu_custom_call.1} parent=1 // pred_region
      %117 = dma.done [#allocation6], 64
    $region57: #{tpu_custom_call.1} parent=1 // pred_fallthru
      _
    // Predicated region
    $region58: #{tpu_custom_call.1} parent=1 // pred_check
      _
    $region59: #{tpu_custom_call.1} parent=1 // pred_check_branch
      %119 = sbr.rel (0) target = $region61
    $region60: #{tpu_custom_call.1} parent=1 // pred_region
      %120 = dma.done [#allocation9], 8192
    $region61: #{tpu_custom_call.1} parent=1 // pred_fallthru
      _
    // Predicated region
    $region62: #{tpu_custom_call.1} parent=1 // pred_check
      _
    $region63: #{tpu_custom_call.1} parent=1 // pred_check_branch
      %122 = sbr.rel (0) target = $region65
    $region64: #{tpu_custom_call.1} parent=1 // pred_region
      %123 = dma.done [#allocation9], 4096
    $region65: #{tpu_custom_call.1} parent=1 // pred_fallthru
      _
    // Predicated region
    $region66: #{tpu_custom_call.1} parent=1 // pred_check
      _
    $region67: #{tpu_custom_call.1} parent=1 // pred_check_branch
      %125 = sbr.rel (0) target = $region69
    $region68: #{tpu_custom_call.1} parent=1 // pred_region
      %126 = dma.done [#allocation12], 6144
    $region69: #{tpu_custom_call.1} parent=1 // pred_fallthru
      _
    // Predicated region
    $region70: #{tpu_custom_call.1} parent=1 // pred_check
      _
    $region71: #{tpu_custom_call.1} parent=1 // pred_check_branch
      %128 = sbr.rel (0) target = $region73
    $region72: #{tpu_custom_call.1} parent=1 // pred_region
      %129 = dma.done [#allocation12], 3072
    $region73: #{tpu_custom_call.1} parent=1 // pred_fallthru
      _
    %v135 = vld [vmem:[#allocation2] sm:$0xff]
    %v136 = vpack.c.bf16 %v135, %v135
    %v137 = vld [vmem:[#allocation5] sm:$0xff]
    %v138 = vld [vmem:[#allocation5 + $0x8] sm:$0xff]
    %v139 = vld [vmem:[#allocation5 + $0x10] sm:$0xff]
    %v140 = vld [vmem:[#allocation5 + $0x18] sm:$0xff]
    %v141 = vld [vmem:[#allocation5 + $0x20] sm:$0xff]
    %v142 = vld [vmem:[#allocation5 + $0x28] sm:$0xff]
    %v143 = vld [vmem:[#allocation5 + $0x30] sm:$0xff]
    %v144 = vld [vmem:[#allocation5 + $0x38] sm:$0xff]
    %v145 = vld [vmem:[#allocation5 + $0x40] sm:$0xff]
    %v146 = vld [vmem:[#allocation5 + $0x48] sm:$0xff]
    %v147 = vld [vmem:[#allocation5 + $0x50] sm:$0xff]
    %v148 = vld [vmem:[#allocation5 + $0x58] sm:$0xff]
    %v149 = vld [vmem:[#allocation5 + $0x60] sm:$0xff]
    %v150 = vld [vmem:[#allocation5 + $0x68] sm:$0xff]
    %v151 = vld [vmem:[#allocation5 + $0x70] sm:$0xff]
    %v152 = vld [vmem:[#allocation5 + $0x78] sm:$0xff]
    %v153 = vld [vmem:[#allocation5 + $0x80] sm:$0xff]
    %v154 = vld [vmem:[#allocation5 + $0x88] sm:$0xff]
    %v155 = vld [vmem:[#allocation5 + $0x90] sm:$0xff]
    %v156 = vld [vmem:[#allocation5 + $0x98] sm:$0xff]
    %v157 = vld [vmem:[#allocation5 + $0xa0] sm:$0xff]
    %v158 = vld [vmem:[#allocation5 + $0xa8] sm:$0xff]
    %v159 = vld [vmem:[#allocation5 + $0xb0] sm:$0xff]
    %v160 = vld [vmem:[#allocation5 + $0xb8] sm:$0xff]
    %v161 = vld [vmem:[#allocation5 + $0xc0] sm:$0xff]
    %v162 = vld [vmem:[#allocation5 + $0xc8] sm:$0xff]
    %v163 = vld [vmem:[#allocation5 + $0xd0] sm:$0xff]
    %v164 = vld [vmem:[#allocation5 + $0xd8] sm:$0xff]
    %v165 = vld [vmem:[#allocation5 + $0xe0] sm:$0xff]
    %v166 = vld [vmem:[#allocation5 + $0xe8] sm:$0xff]
    %v167 = vld [vmem:[#allocation5 + $0xf0] sm:$0xff]
    %v168 = vld [vmem:[#allocation5 + $0xf8] sm:$0xff]
    %v201 = vunpack.c.l.b16 %v137
    %v202 = vunpack.c.h.b16 %v137
    %v203 = vunpack.c.l.b16 %v138
    %v204 = vunpack.c.h.b16 %v138
    %v205 = vunpack.c.l.b16 %v139
    %v206 = vunpack.c.h.b16 %v139
    %v207 = vunpack.c.l.b16 %v140
    %v208 = vunpack.c.h.b16 %v140
    %v209 = vunpack.c.l.b16 %v141
    %v210 = vunpack.c.h.b16 %v141
    %v211 = vunpack.c.l.b16 %v142
    %v212 = vunpack.c.h.b16 %v142
    %v213 = vunpack.c.l.b16 %v143
    %v214 = vunpack.c.h.b16 %v143
    %v215 = vunpack.c.l.b16 %v144
    %v216 = vunpack.c.h.b16 %v144
    %v217 = vunpack.c.l.b16 %v145
    %v218 = vunpack.c.h.b16 %v145
    %v219 = vunpack.c.l.b16 %v146
    %v220 = vunpack.c.h.b16 %v146
    %v221 = vunpack.c.l.b16 %v147
    %v222 = vunpack.c.h.b16 %v147
    %v223 = vunpack.c.l.b16 %v148
    %v224 = vunpack.c.h.b16 %v148
    %v225 = vunpack.c.l.b16 %v149
    %v226 = vunpack.c.h.b16 %v149
    %v227 = vunpack.c.l.b16 %v150
    %v228 = vunpack.c.h.b16 %v150
    %v229 = vunpack.c.l.b16 %v151
    %v230 = vunpack.c.h.b16 %v151
    %v231 = vunpack.c.l.b16 %v152
    %v232 = vunpack.c.h.b16 %v152
    %v233 = vunpack.c.l.b16 %v153
    %v234 = vunpack.c.h.b16 %v153
    %v235 = vunpack.c.l.b16 %v154
    %v236 = vunpack.c.h.b16 %v154
    %v237 = vunpack.c.l.b16 %v155
    %v238 = vunpack.c.h.b16 %v155
    %v239 = vunpack.c.l.b16 %v156
    %v240 = vunpack.c.h.b16 %v156
    %v241 = vunpack.c.l.b16 %v157
    %v242 = vunpack.c.h.b16 %v157
    %v243 = vunpack.c.l.b16 %v158
    %v244 = vunpack.c.h.b16 %v158
    %v245 = vunpack.c.l.b16 %v159
    %v246 = vunpack.c.h.b16 %v159
    %v247 = vunpack.c.l.b16 %v160
    %v248 = vunpack.c.h.b16 %v160
    %v249 = vunpack.c.l.b16 %v161
    %v250 = vunpack.c.h.b16 %v161
    %v251 = vunpack.c.l.b16 %v162
    %v252 = vunpack.c.h.b16 %v162
    %v253 = vunpack.c.l.b16 %v163
    %v254 = vunpack.c.h.b16 %v163
    %v255 = vunpack.c.l.b16 %v164
    %v256 = vunpack.c.h.b16 %v164
    %v257 = vunpack.c.l.b16 %v165
    %v258 = vunpack.c.h.b16 %v165
    %v259 = vunpack.c.l.b16 %v166
    %v260 = vunpack.c.h.b16 %v166
    %v261 = vunpack.c.l.b16 %v167
    %v262 = vunpack.c.h.b16 %v167
    %v263 = vunpack.c.l.b16 %v168
    %v264 = vunpack.c.h.b16 %v168
    %v265 = vpack.c.b16 %v205, %v201
    %v266 = vpack.c.b16 %v206, %v202
    %v267 = vpack.c.b16 %v207, %v203
    %v268 = vpack.c.b16 %v208, %v204
    %v269 = vpack.c.b16 %v213, %v209
    %v270 = vpack.c.b16 %v214, %v210
    %v271 = vpack.c.b16 %v215, %v211
    %v272 = vpack.c.b16 %v216, %v212
    %v273 = vpack.c.b16 %v221, %v217
    %v274 = vpack.c.b16 %v222, %v218
    %v275 = vpack.c.b16 %v223, %v219
    %v276 = vpack.c.b16 %v224, %v220
    %v277 = vpack.c.b16 %v229, %v225
    %v278 = vpack.c.b16 %v230, %v226
    %v279 = vpack.c.b16 %v231, %v227
    %v280 = vpack.c.b16 %v232, %v228
    %v281 = vpack.c.b16 %v237, %v233
    %v282 = vpack.c.b16 %v238, %v234
    %v283 = vpack.c.b16 %v239, %v235
    %v284 = vpack.c.b16 %v240, %v236
    %v285 = vpack.c.b16 %v245, %v241
    %v286 = vpack.c.b16 %v246, %v242
    %v287 = vpack.c.b16 %v247, %v243
    %v288 = vpack.c.b16 %v248, %v244
    %v289 = vpack.c.b16 %v253, %v249
    %v290 = vpack.c.b16 %v254, %v250
    %v291 = vpack.c.b16 %v255, %v251
    %v292 = vpack.c.b16 %v256, %v252
    %v293 = vpack.c.b16 %v261, %v257
    %v294 = vpack.c.b16 %v262, %v258
    %v295 = vpack.c.b16 %v263, %v259
    %v296 = vpack.c.b16 %v264, %v260
    %329 = vmatprep.subr.bf16.mxu0 %v294
    %330 = vmatpush1.bf16.msra.mxu0 %v293
    %331 = vmatprep.subr.bf16.mxu0 %v290
    %332 = vmatpush1.bf16.msra.mxu0 %v289
    %333 = vmatprep.subr.bf16.mxu0 %v286
    %334 = vmatpush1.bf16.msra.mxu0 %v285
    %335 = vmatprep.subr.bf16.mxu0 %v282
    %336 = vmatpush1.bf16.msra.mxu0 %v281
    %337 = vmatprep.subr.bf16.mxu0 %v278
    %338 = vmatpush1.bf16.msra.mxu0 %v277
    %339 = vmatprep.subr.bf16.mxu0 %v274
    %340 = vmatpush1.bf16.msra.mxu0 %v273
    %341 = vmatprep.subr.bf16.mxu0 %v270
    %342 = vmatpush1.bf16.msra.mxu0 %v269
    %343 = vmatprep.subr.bf16.mxu0 %v266
    %344 = vmatpush1.bf16.msra.mxu0 %v265
    %345 = vmatprep.subr.bf16.mxu0 0
    %346 = vmatpush2.bf16.msra.mxu0 0
    %347 = vmatprep.subr.bf16.mxu0 0
    %348 = vmatpush2.bf16.msra.mxu0 0
    %349 = vmatprep.subr.bf16.mxu0 0
    %350 = vmatpush2.bf16.msra.mxu0 0
    %351 = vmatprep.subr.bf16.mxu0 0
    %352 = vmatpush2.bf16.msra.mxu0 0
    %353 = vmatprep.subr.bf16.mxu0 0
    %354 = vmatpush2.bf16.msra.mxu0 0
    %355 = vmatprep.subr.bf16.mxu0 0
    %356 = vmatpush2.bf16.msra.mxu0 0
    %357 = vmatprep.subr.bf16.mxu0 0
    %358 = vmatpush2.bf16.msra.mxu0 0
    %359 = vmatprep.subr.bf16.mxu0 0
    %360 = vmatpush2.bf16.msra.mxu0 0
    %361 = vmatprep.mubr.bf16.mxu0 0
    %362 = vmatmul.mubr.bf16.gmra.mxu0 %v136
    %v363 = vpop.f32.mrf.mxu0
    %v364 = vadd.f32 0.0, %v363
    %v365 = vpop.f32.mrf.mxu0
    %v366 = vadd.f32 0.0, %v365
    %v367 = vpop.f32.mrf.mxu0
    %v368 = vpop.f32.mrf.mxu0
    %369 = vdwg.mxu0
    %370 = vmatprep.subr.bf16.mxu0 %v296
    %371 = vmatpush1.bf16.msra.mxu0 %v295
    %372 = vmatprep.subr.bf16.mxu0 %v292
    %373 = vmatpush1.bf16.msra.mxu0 %v291
    %374 = vmatprep.subr.bf16.mxu0 %v288
    %375 = vmatpush1.bf16.msra.mxu0 %v287
    %376 = vmatprep.subr.bf16.mxu0 %v284
    %377 = vmatpush1.bf16.msra.mxu0 %v283
    %378 = vmatprep.subr.bf16.mxu0 %v280
    %379 = vmatpush1.bf16.msra.mxu0 %v279
    %380 = vmatprep.subr.bf16.mxu0 %v276
    %381 = vmatpush1.bf16.msra.mxu0 %v275
    %382 = vmatprep.subr.bf16.mxu0 %v272
    %383 = vmatpush1.bf16.msra.mxu0 %v271
    %384 = vmatprep.subr.bf16.mxu0 %v268
    %385 = vmatpush1.bf16.msra.mxu0 %v267
    %386 = vmatprep.subr.bf16.mxu0 0
    %387 = vmatpush2.bf16.msra.mxu0 0
    %388 = vmatprep.subr.bf16.mxu0 0
    %389 = vmatpush2.bf16.msra.mxu0 0
    %390 = vmatprep.subr.bf16.mxu0 0
    %391 = vmatpush2.bf16.msra.mxu0 0
    %392 = vmatprep.subr.bf16.mxu0 0
    %393 = vmatpush2.bf16.msra.mxu0 0
    %394 = vmatprep.subr.bf16.mxu0 0
    %395 = vmatpush2.bf16.msra.mxu0 0
    %396 = vmatprep.subr.bf16.mxu0 0
    %397 = vmatpush2.bf16.msra.mxu0 0
    %398 = vmatprep.subr.bf16.mxu0 0
    %399 = vmatpush2.bf16.msra.mxu0 0
    %400 = vmatprep.subr.bf16.mxu0 0
    %401 = vmatpush2.bf16.msra.mxu0 0
    %402 = vmatprep.mubr.bf16.mxu0 0
    %403 = vmatmul.mubr.bf16.gmra.mxu0 %v136
    %v404 = vpop.f32.mrf.mxu0
    %v405 = vadd.f32 0.0, %v404
    %v406 = vpop.f32.mrf.mxu0
    %v407 = vadd.f32 0.0, %v406
    %v408 = vpop.f32.mrf.mxu0
    %v409 = vpop.f32.mrf.mxu0
    %410 = vdwg.mxu0
    %v411 = vpack.c.bf16 %v364, %v364
    %v412 = vpack.c.bf16 %v366, %v366
    %v413 = vpack.c.bf16 %v405, %v405
    %v414 = vpack.c.bf16 %v407, %v407
    %v415 = vld [vmem:[#allocation7] sm:$0xf]
    %v418 = vunpack.c.l.s4 1966171168
    %v419 = vunpack.c.0.s8 %v418
    %v420 = vlaneseq
    %v421 = vshrl.u32 %v420, 7
    %v422 = vsub.s32 %v419, %v421
    %v423 = vrot.slane %v415, %v422
    %v424 = vcombine.high %v423, %v423
    %v426 = vunpack.c.l.s4 1966171168
    %v427 = vunpack.c.0.s8 %v426
    %v428 = vlaneseq
    %v429 = vshrl.u32 %v428, 7
    %v430 = vsub.s32 %v427, %v429
    %v431 = vrot.slane %v423, %v430
    %v433 = vunpack.c.l.s4 1966171168
    %v434 = vunpack.c.0.s8 %v433
    %v435 = vlaneseq
    %v436 = vshrl.u32 %v435, 7
    %v437 = vsub.s32 %v434, %v436
    %v438 = vrot.slane %v424, %v437
    %v439 = vcombine.high %v431, %v431
    %v440 = vcombine.high %v438, %v438
    %v442 = vpack.i.b16 %v431, %v431
    %v444 = vlaneseq
    %v445 = vshrl.u32 %v444, 7
    %v446 = vsub.s32 0, %v445
    %v447 = vrot.slane %v442, %v446
    %v449 = vpack.i.b16 %v438, %v438
    %v451 = vlaneseq
    %v452 = vshrl.u32 %v451, 7
    %v453 = vsub.s32 0, %v452
    %v454 = vrot.slane %v449, %v453
    %v456 = vpack.i.b16 %v439, %v439
    %v458 = vlaneseq
    %v459 = vshrl.u32 %v458, 7
    %v460 = vsub.s32 0, %v459
    %v461 = vrot.slane %v456, %v460
    %v463 = vpack.i.b16 %v440, %v440
    %v465 = vlaneseq
    %v466 = vshrl.u32 %v465, 7
    %v467 = vsub.s32 0, %v466
    %v468 = vrot.slane %v463, %v467
    %v469 = vadd.bf16 %v411, %v447
    %v470 = vadd.bf16 %v412, %v454
    %v471 = vadd.bf16 %v413, %v461
    %v472 = vadd.bf16 %v414, %v468
    %v473 = vmul.bf16 %v469, 1056980736
    %v474 = vmul.bf16 %v470, 1056980736
    %v475 = vmul.bf16 %v471, 1056980736
    %v476 = vmul.bf16 %v472, 1056980736
    %v477 = vmul.bf16 %v469, 1027030327
    %v478 = vmul.bf16 %v470, 1027030327
    %v479 = vmul.bf16 %v471, 1027030327
    %v480 = vmul.bf16 %v472, 1027030327
    %v481 = vmul.bf16 %v477, %v469
    %v482 = vmul.bf16 %v478, %v470
    %v483 = vmul.bf16 %v479, %v471
    %v484 = vmul.bf16 %v480, %v472
    %v485 = vmul.bf16 %v481, %v469
    %v486 = vmul.bf16 %v482, %v470
    %v487 = vmul.bf16 %v483, %v471
    %v488 = vmul.bf16 %v484, %v472
    %v489 = vadd.bf16 %v469, %v485
    %v490 = vadd.bf16 %v470, %v486
    %v491 = vadd.bf16 %v471, %v487
    %v492 = vadd.bf16 %v472, %v488
    %v493 = vmul.bf16 %v489, 1061961548
    %v494 = vmul.bf16 %v490, 1061961548
    %v495 = vmul.bf16 %v491, 1061961548
    %v496 = vmul.bf16 %v492, 1061961548
    %v497 = vtanh.bf16.pop %v493
    %v498 = vtanh.bf16.pop %v494
    %v499 = vtanh.bf16.pop %v495
    %v500 = vtanh.bf16.pop %v496
    %v501 = vadd.bf16 %v497, 1065369472
    %v502 = vadd.bf16 %v498, 1065369472
    %v503 = vadd.bf16 %v499, 1065369472
    %v504 = vadd.bf16 %v500, 1065369472
    %v505 = vmul.bf16 %v473, %v501
    %v506 = vmul.bf16 %v474, %v502
    %v507 = vmul.bf16 %v475, %v503
    %v508 = vmul.bf16 %v476, %v504
    %v509 = vld [vmem:[#allocation8] sm:$0xff]
    %v510 = vld [vmem:[#allocation8 + $0x8] sm:$0xff]
    %v511 = vld [vmem:[#allocation8 + $0x10] sm:$0xff]
    %v512 = vld [vmem:[#allocation8 + $0x18] sm:$0xff]
    %v513 = vld [vmem:[#allocation8 + $0x20] sm:$0xff]
    %v514 = vld [vmem:[#allocation8 + $0x28] sm:$0xff]
    %v515 = vld [vmem:[#allocation8 + $0x30] sm:$0xff]
    %v516 = vld [vmem:[#allocation8 + $0x38] sm:$0xff]
    %v517 = vld [vmem:[#allocation8 + $0x40] sm:$0xff]
    %v518 = vld [vmem:[#allocation8 + $0x48] sm:$0xff]
    %v519 = vld [vmem:[#allocation8 + $0x50] sm:$0xff]
    %v520 = vld [vmem:[#allocation8 + $0x58] sm:$0xff]
    %v521 = vld [vmem:[#allocation8 + $0x60] sm:$0xff]
    %v522 = vld [vmem:[#allocation8 + $0x68] sm:$0xff]
    %v523 = vld [vmem:[#allocation8 + $0x70] sm:$0xff]
    %v524 = vld [vmem:[#allocation8 + $0x78] sm:$0xff]
    %v525 = vld [vmem:[#allocation8 + $0x80] sm:$0xff]
    %v526 = vld [vmem:[#allocation8 + $0x88] sm:$0xff]
    %v527 = vld [vmem:[#allocation8 + $0x90] sm:$0xff]
    %v528 = vld [vmem:[#allocation8 + $0x98] sm:$0xff]
    %v529 = vld [vmem:[#allocation8 + $0xa0] sm:$0xff]
    %v530 = vld [vmem:[#allocation8 + $0xa8] sm:$0xff]
    %v531 = vld [vmem:[#allocation8 + $0xb0] sm:$0xff]
    %v532 = vld [vmem:[#allocation8 + $0xb8] sm:$0xff]
    %v533 = vld [vmem:[#allocation8 + $0xc0] sm:$0xff]
    %v534 = vld [vmem:[#allocation8 + $0xc8] sm:$0xff]
    %v535 = vld [vmem:[#allocation8 + $0xd0] sm:$0xff]
    %v536 = vld [vmem:[#allocation8 + $0xd8] sm:$0xff]
    %v537 = vld [vmem:[#allocation8 + $0xe0] sm:$0xff]
    %v538 = vld [vmem:[#allocation8 + $0xe8] sm:$0xff]
    %v539 = vld [vmem:[#allocation8 + $0xf0] sm:$0xff]
    %v540 = vld [vmem:[#allocation8 + $0xf8] sm:$0xff]
    %v541 = vld [vmem:[#allocation8 + $0x100] sm:$0xff]
    %v542 = vld [vmem:[#allocation8 + $0x108] sm:$0xff]
    %v543 = vld [vmem:[#allocation8 + $0x110] sm:$0xff]
    %v544 = vld [vmem:[#allocation8 + $0x118] sm:$0xff]
    %v545 = vld [vmem:[#allocation8 + $0x120] sm:$0xff]
    %v546 = vld [vmem:[#allocation8 + $0x128] sm:$0xff]
    %v547 = vld [vmem:[#allocation8 + $0x130] sm:$0xff]
    %v548 = vld [vmem:[#allocation8 + $0x138] sm:$0xff]
    %v549 = vld [vmem:[#allocation8 + $0x140] sm:$0xff]
    %v550 = vld [vmem:[#allocation8 + $0x148] sm:$0xff]
    %v551 = vld [vmem:[#allocation8 + $0x150] sm:$0xff]
    %v552 = vld [vmem:[#allocation8 + $0x158] sm:$0xff]
    %v553 = vld [vmem:[#allocation8 + $0x160] sm:$0xff]
    %v554 = vld [vmem:[#allocation8 + $0x168] sm:$0xff]
    %v555 = vld [vmem:[#allocation8 + $0x170] sm:$0xff]
    %v556 = vld [vmem:[#allocation8 + $0x178] sm:$0xff]
    %v557 = vld [vmem:[#allocation8 + $0x180] sm:$0xff]
    %v558 = vld [vmem:[#allocation8 + $0x188] sm:$0xff]
    %v559 = vld [vmem:[#allocation8 + $0x190] sm:$0xff]
    %v560 = vld [vmem:[#allocation8 + $0x198] sm:$0xff]
    %v561 = vld [vmem:[#allocation8 + $0x1a0] sm:$0xff]
    %v562 = vld [vmem:[#allocation8 + $0x1a8] sm:$0xff]
    %v563 = vld [vmem:[#allocation8 + $0x1b0] sm:$0xff]
    %v564 = vld [vmem:[#allocation8 + $0x1b8] sm:$0xff]
    %v565 = vld [vmem:[#allocation8 + $0x1c0] sm:$0xff]
    %v566 = vld [vmem:[#allocation8 + $0x1c8] sm:$0xff]
    %v567 = vld [vmem:[#allocation8 + $0x1d0] sm:$0xff]
    %v568 = vld [vmem:[#allocation8 + $0x1d8] sm:$0xff]
    %v569 = vld [vmem:[#allocation8 + $0x1e0] sm:$0xff]
    %v570 = vld [vmem:[#allocation8 + $0x1e8] sm:$0xff]
    %v571 = vld [vmem:[#allocation8 + $0x1f0] sm:$0xff]
    %v572 = vld [vmem:[#allocation8 + $0x1f8] sm:$0xff]
    %v637 = vunpack.c.l.b16 %v509
    %v638 = vunpack.c.h.b16 %v509
    %v639 = vunpack.c.l.b16 %v510
    %v640 = vunpack.c.h.b16 %v510
    %v641 = vunpack.c.l.b16 %v511
    %v642 = vunpack.c.h.b16 %v511
    %v643 = vunpack.c.l.b16 %v512
    %v644 = vunpack.c.h.b16 %v512
    %v645 = vunpack.c.l.b16 %v513
    %v646 = vunpack.c.h.b16 %v513
    %v647 = vunpack.c.l.b16 %v514
    %v648 = vunpack.c.h.b16 %v514
    %v649 = vunpack.c.l.b16 %v515
    %v650 = vunpack.c.h.b16 %v515
    %v651 = vunpack.c.l.b16 %v516
    %v652 = vunpack.c.h.b16 %v516
    %v653 = vunpack.c.l.b16 %v517
    %v654 = vunpack.c.h.b16 %v517
    %v655 = vunpack.c.l.b16 %v518
    %v656 = vunpack.c.h.b16 %v518
    %v657 = vunpack.c.l.b16 %v519
    %v658 = vunpack.c.h.b16 %v519
    %v659 = vunpack.c.l.b16 %v520
    %v660 = vunpack.c.h.b16 %v520
    %v661 = vunpack.c.l.b16 %v521
    %v662 = vunpack.c.h.b16 %v521
    %v663 = vunpack.c.l.b16 %v522
    %v664 = vunpack.c.h.b16 %v522
    %v665 = vunpack.c.l.b16 %v523
    %v666 = vunpack.c.h.b16 %v523
    %v667 = vunpack.c.l.b16 %v524
    %v668 = vunpack.c.h.b16 %v524
    %v669 = vunpack.c.l.b16 %v525
    %v670 = vunpack.c.h.b16 %v525
    %v671 = vunpack.c.l.b16 %v526
    %v672 = vunpack.c.h.b16 %v526
    %v673 = vunpack.c.l.b16 %v527
    %v674 = vunpack.c.h.b16 %v527
    %v675 = vunpack.c.l.b16 %v528
    %v676 = vunpack.c.h.b16 %v528
    %v677 = vunpack.c.l.b16 %v529
    %v678 = vunpack.c.h.b16 %v529
    %v679 = vunpack.c.l.b16 %v530
    %v680 = vunpack.c.h.b16 %v530
    %v681 = vunpack.c.l.b16 %v531
    %v682 = vunpack.c.h.b16 %v531
    %v683 = vunpack.c.l.b16 %v532
    %v684 = vunpack.c.h.b16 %v532
    %v685 = vunpack.c.l.b16 %v533
    %v686 = vunpack.c.h.b16 %v533
    %v687 = vunpack.c.l.b16 %v534
    %v688 = vunpack.c.h.b16 %v534
    %v689 = vunpack.c.l.b16 %v535
    %v690 = vunpack.c.h.b16 %v535
    %v691 = vunpack.c.l.b16 %v536
    %v692 = vunpack.c.h.b16 %v536
    %v693 = vunpack.c.l.b16 %v537
    %v694 = vunpack.c.h.b16 %v537
    %v695 = vunpack.c.l.b16 %v538
    %v696 = vunpack.c.h.b16 %v538
    %v697 = vunpack.c.l.b16 %v539
    %v698 = vunpack.c.h.b16 %v539
    %v699 = vunpack.c.l.b16 %v540
    %v700 = vunpack.c.h.b16 %v540
    %v701 = vunpack.c.l.b16 %v541
    %v702 = vunpack.c.h.b16 %v541
    %v703 = vunpack.c.l.b16 %v542
    %v704 = vunpack.c.h.b16 %v542
    %v705 = vunpack.c.l.b16 %v543
    %v706 = vunpack.c.h.b16 %v543
    %v707 = vunpack.c.l.b16 %v544
    %v708 = vunpack.c.h.b16 %v544
    %v709 = vunpack.c.l.b16 %v545
    %v710 = vunpack.c.h.b16 %v545
    %v711 = vunpack.c.l.b16 %v546
    %v712 = vunpack.c.h.b16 %v546
    %v713 = vunpack.c.l.b16 %v547
    %v714 = vunpack.c.h.b16 %v547
    %v715 = vunpack.c.l.b16 %v548
    %v716 = vunpack.c.h.b16 %v548
    %v717 = vunpack.c.l.b16 %v549
    %v718 = vunpack.c.h.b16 %v549
    %v719 = vunpack.c.l.b16 %v550
    %v720 = vunpack.c.h.b16 %v550
    %v721 = vunpack.c.l.b16 %v551
    %v722 = vunpack.c.h.b16 %v551
    %v723 = vunpack.c.l.b16 %v552
    %v724 = vunpack.c.h.b16 %v552
    %v725 = vunpack.c.l.b16 %v553
    %v726 = vunpack.c.h.b16 %v553
    %v727 = vunpack.c.l.b16 %v554
    %v728 = vunpack.c.h.b16 %v554
    %v729 = vunpack.c.l.b16 %v555
    %v730 = vunpack.c.h.b16 %v555
    %v731 = vunpack.c.l.b16 %v556
    %v732 = vunpack.c.h.b16 %v556
    %v733 = vunpack.c.l.b16 %v557
    %v734 = vunpack.c.h.b16 %v557
    %v735 = vunpack.c.l.b16 %v558
    %v736 = vunpack.c.h.b16 %v558
    %v737 = vunpack.c.l.b16 %v559
    %v738 = vunpack.c.h.b16 %v559
    %v739 = vunpack.c.l.b16 %v560
    %v740 = vunpack.c.h.b16 %v560
    %v741 = vunpack.c.l.b16 %v561
    %v742 = vunpack.c.h.b16 %v561
    %v743 = vunpack.c.l.b16 %v562
    %v744 = vunpack.c.h.b16 %v562
    %v745 = vunpack.c.l.b16 %v563
    %v746 = vunpack.c.h.b16 %v563
    %v747 = vunpack.c.l.b16 %v564
    %v748 = vunpack.c.h.b16 %v564
    %v749 = vunpack.c.l.b16 %v565
    %v750 = vunpack.c.h.b16 %v565
    %v751 = vunpack.c.l.b16 %v566
    %v752 = vunpack.c.h.b16 %v566
    %v753 = vunpack.c.l.b16 %v567
    %v754 = vunpack.c.h.b16 %v567
    %v755 = vunpack.c.l.b16 %v568
    %v756 = vunpack.c.h.b16 %v568
    %v757 = vunpack.c.l.b16 %v569
    %v758 = vunpack.c.h.b16 %v569
    %v759 = vunpack.c.l.b16 %v570
    %v760 = vunpack.c.h.b16 %v570
    %v761 = vunpack.c.l.b16 %v571
    %v762 = vunpack.c.h.b16 %v571
    %v763 = vunpack.c.l.b16 %v572
    %v764 = vunpack.c.h.b16 %v572
    %v765 = vpack.c.b16 %v639, %v637
    %v766 = vpack.c.b16 %v640, %v638
    %v767 = vpack.c.b16 %v643, %v641
    %v768 = vpack.c.b16 %v644, %v642
    %v769 = vpack.c.b16 %v647, %v645
    %v770 = vpack.c.b16 %v648, %v646
    %v771 = vpack.c.b16 %v651, %v649
    %v772 = vpack.c.b16 %v652, %v650
    %v773 = vpack.c.b16 %v655, %v653
    %v774 = vpack.c.b16 %v656, %v654
    %v775 = vpack.c.b16 %v659, %v657
    %v776 = vpack.c.b16 %v660, %v658
    %v777 = vpack.c.b16 %v663, %v661
    %v778 = vpack.c.b16 %v664, %v662
    %v779 = vpack.c.b16 %v667, %v665
    %v780 = vpack.c.b16 %v668, %v666
    %v781 = vpack.c.b16 %v671, %v669
    %v782 = vpack.c.b16 %v672, %v670
    %v783 = vpack.c.b16 %v675, %v673
    %v784 = vpack.c.b16 %v676, %v674
    %v785 = vpack.c.b16 %v679, %v677
    %v786 = vpack.c.b16 %v680, %v678
    %v787 = vpack.c.b16 %v683, %v681
    %v788 = vpack.c.b16 %v684, %v682
    %v789 = vpack.c.b16 %v687, %v685
    %v790 = vpack.c.b16 %v688, %v686
    %v791 = vpack.c.b16 %v691, %v689
    %v792 = vpack.c.b16 %v692, %v690
    %v793 = vpack.c.b16 %v695, %v693
    %v794 = vpack.c.b16 %v696, %v694
    %v795 = vpack.c.b16 %v699, %v697
    %v796 = vpack.c.b16 %v700, %v698
    %v797 = vpack.c.b16 %v703, %v701
    %v798 = vpack.c.b16 %v704, %v702
    %v799 = vpack.c.b16 %v707, %v705
    %v800 = vpack.c.b16 %v708, %v706
    %v801 = vpack.c.b16 %v711, %v709
    %v802 = vpack.c.b16 %v712, %v710
    %v803 = vpack.c.b16 %v715, %v713
    %v804 = vpack.c.b16 %v716, %v714
    %v805 = vpack.c.b16 %v719, %v717
    %v806 = vpack.c.b16 %v720, %v718
    %v807 = vpack.c.b16 %v723, %v721
    %v808 = vpack.c.b16 %v724, %v722
    %v809 = vpack.c.b16 %v727, %v725
    %v810 = vpack.c.b16 %v728, %v726
    %v811 = vpack.c.b16 %v731, %v729
    %v812 = vpack.c.b16 %v732, %v730
    %v813 = vpack.c.b16 %v735, %v733
    %v814 = vpack.c.b16 %v736, %v734
    %v815 = vpack.c.b16 %v739, %v737
    %v816 = vpack.c.b16 %v740, %v738
    %v817 = vpack.c.b16 %v743, %v741
    %v818 = vpack.c.b16 %v744, %v742
    %v819 = vpack.c.b16 %v747, %v745
    %v820 = vpack.c.b16 %v748, %v746
    %v821 = vpack.c.b16 %v751, %v749
    %v822 = vpack.c.b16 %v752, %v750
    %v823 = vpack.c.b16 %v755, %v753
    %v824 = vpack.c.b16 %v756, %v754
    %v825 = vpack.c.b16 %v759, %v757
    %v826 = vpack.c.b16 %v760, %v758
    %v827 = vpack.c.b16 %v763, %v761
    %v828 = vpack.c.b16 %v764, %v762
    %893 = vmatprep.subr.bf16.mxu0 %v780
    %894 = vmatpush1.bf16.msra.mxu0 %v779
    %895 = vmatprep.subr.bf16.mxu0 %v778
    %896 = vmatpush1.bf16.msra.mxu0 %v777
    %897 = vmatprep.subr.bf16.mxu0 %v776
    %898 = vmatpush1.bf16.msra.mxu0 %v775
    %899 = vmatprep.subr.bf16.mxu0 %v774
    %900 = vmatpush1.bf16.msra.mxu0 %v773
    %901 = vmatprep.subr.bf16.mxu0 %v772
    %902 = vmatpush1.bf16.msra.mxu0 %v771
    %903 = vmatprep.subr.bf16.mxu0 %v770
    %904 = vmatpush1.bf16.msra.mxu0 %v769
    %905 = vmatprep.subr.bf16.mxu0 %v768
    %906 = vmatpush1.bf16.msra.mxu0 %v767
    %907 = vmatprep.subr.bf16.mxu0 %v766
    %908 = vmatpush1.bf16.msra.mxu0 %v765
    %909 = vmatprep.subr.bf16.mxu0 %v796
    %910 = vmatpush2.bf16.msra.mxu0 %v795
    %911 = vmatprep.subr.bf16.mxu0 %v794
    %912 = vmatpush2.bf16.msra.mxu0 %v793
    %913 = vmatprep.subr.bf16.mxu0 %v792
    %914 = vmatpush2.bf16.msra.mxu0 %v791
    %915 = vmatprep.subr.bf16.mxu0 %v790
    %916 = vmatpush2.bf16.msra.mxu0 %v789
    %917 = vmatprep.subr.bf16.mxu0 %v788
    %918 = vmatpush2.bf16.msra.mxu0 %v787
    %919 = vmatprep.subr.bf16.mxu0 %v786
    %920 = vmatpush2.bf16.msra.mxu0 %v785
    %921 = vmatprep.subr.bf16.mxu0 %v784
    %922 = vmatpush2.bf16.msra.mxu0 %v783
    %923 = vmatprep.subr.bf16.mxu0 %v782
    %924 = vmatpush2.bf16.msra.mxu0 %v781
    %925 = vmatprep.mubr.bf16.mxu0 %v506
    %926 = vmatmul.mubr.bf16.gmra.mxu0 %v505
    %v927 = vpop.f32.mrf.mxu0
    %v928 = vadd.f32 0.0, %v927
    %v929 = vpop.f32.mrf.mxu0
    %v930 = vadd.f32 0.0, %v929
    %v931 = vpop.f32.mrf.mxu0
    %v932 = vpop.f32.mrf.mxu0
    %933 = vdwg.mxu0
    %934 = vmatprep.subr.bf16.mxu0 %v812
    %935 = vmatpush1.bf16.msra.mxu0 %v811
    %936 = vmatprep.subr.bf16.mxu0 %v810
    %937 = vmatpush1.bf16.msra.mxu0 %v809
    %938 = vmatprep.subr.bf16.mxu0 %v808
    %939 = vmatpush1.bf16.msra.mxu0 %v807
    %940 = vmatprep.subr.bf16.mxu0 %v806
    %941 = vmatpush1.bf16.msra.mxu0 %v805
    %942 = vmatprep.subr.bf16.mxu0 %v804
    %943 = vmatpush1.bf16.msra.mxu0 %v803
    %944 = vmatprep.subr.bf16.mxu0 %v802
    %945 = vmatpush1.bf16.msra.mxu0 %v801
    %946 = vmatprep.subr.bf16.mxu0 %v800
    %947 = vmatpush1.bf16.msra.mxu0 %v799
    %948 = vmatprep.subr.bf16.mxu0 %v798
    %949 = vmatpush1.bf16.msra.mxu0 %v797
    %950 = vmatprep.subr.bf16.mxu0 %v828
    %951 = vmatpush2.bf16.msra.mxu0 %v827
    %952 = vmatprep.subr.bf16.mxu0 %v826
    %953 = vmatpush2.bf16.msra.mxu0 %v825
    %954 = vmatprep.subr.bf16.mxu0 %v824
    %955 = vmatpush2.bf16.msra.mxu0 %v823
    %956 = vmatprep.subr.bf16.mxu0 %v822
    %957 = vmatpush2.bf16.msra.mxu0 %v821
    %958 = vmatprep.subr.bf16.mxu0 %v820
    %959 = vmatpush2.bf16.msra.mxu0 %v819
    %960 = vmatprep.subr.bf16.mxu0 %v818
    %961 = vmatpush2.bf16.msra.mxu0 %v817
    %962 = vmatprep.subr.bf16.mxu0 %v816
    %963 = vmatpush2.bf16.msra.mxu0 %v815
    %964 = vmatprep.subr.bf16.mxu0 %v814
    %965 = vmatpush2.bf16.msra.mxu0 %v813
    %966 = vmatprep.mubr.bf16.mxu0 %v508
    %967 = vmatmul.mubr.bf16.gmra.mxu0 %v507
    %v968 = vpop.f32.mrf.mxu0
    %v969 = vadd.f32 %v928, %v968
    %v970 = vpop.f32.mrf.mxu0
    %v971 = vadd.f32 %v930, %v970
    %v972 = vpop.f32.mrf.mxu0
    %v973 = vpop.f32.mrf.mxu0
    %974 = vdwg.mxu0
    %v975 = vpack.c.bf16 %v969, %v969
    %v976 = vpack.c.bf16 %v971, %v971
    %v977 = vld [vmem:[%s4] sm:$0x3]
    %v980 = vunpack.c.l.s4 1966171168
    %v981 = vunpack.c.0.s8 %v980
    %v982 = vlaneseq
    %v983 = vshrl.u32 %v982, 7
    %v984 = vsub.s32 %v981, %v983
    %v985 = vrot.slane %v977, %v984
    %v986 = vcombine.high %v985, %v985
    %v988 = vunpack.c.l.s4 1966171168
    %v989 = vunpack.c.0.s8 %v988
    %v990 = vlaneseq
    %v991 = vshrl.u32 %v990, 7
    %v992 = vsub.s32 %v989, %v991
    %v993 = vrot.slane %v985, %v992
    %v995 = vunpack.c.l.s4 1966171168
    %v996 = vunpack.c.0.s8 %v995
    %v997 = vlaneseq
    %v998 = vshrl.u32 %v997, 7
    %v999 = vsub.s32 %v996, %v998
    %v1000 = vrot.slane %v986, %v999
    %v1002 = vpack.i.b16 %v993, %v993
    %v1004 = vlaneseq
    %v1005 = vshrl.u32 %v1004, 7
    %v1006 = vsub.s32 0, %v1005
    %v1007 = vrot.slane %v1002, %v1006
    %v1009 = vpack.i.b16 %v1000, %v1000
    %v1011 = vlaneseq
    %v1012 = vshrl.u32 %v1011, 7
    %v1013 = vsub.s32 0, %v1012
    %v1014 = vrot.slane %v1009, %v1013
    %v1015 = vadd.bf16 %v975, %v1007
    %v1016 = vadd.bf16 %v976, %v1014
    %v1017 = vmul.bf16 %v1015, 1056980736
    %v1018 = vmul.bf16 %v1016, 1056980736
    %v1019 = vmul.bf16 %v1015, 1027030327
    %v1020 = vmul.bf16 %v1016, 1027030327
    %v1021 = vmul.bf16 %v1019, %v1015
    %v1022 = vmul.bf16 %v1020, %v1016
    %v1023 = vmul.bf16 %v1021, %v1015
    %v1024 = vmul.bf16 %v1022, %v1016
    %v1025 = vadd.bf16 %v1015, %v1023
    %v1026 = vadd.bf16 %v1016, %v1024
    %v1027 = vmul.bf16 %v1025, 1061961548
    %v1028 = vmul.bf16 %v1026, 1061961548
    %v1029 = vtanh.bf16.pop %v1027
    %v1030 = vtanh.bf16.pop %v1028
    %v1031 = vadd.bf16 %v1029, 1065369472
    %v1032 = vadd.bf16 %v1030, 1065369472
    %v1033 = vmul.bf16 %v1017, %v1031
    %v1034 = vmul.bf16 %v1018, %v1032
    %v1035 = vld [vmem:[#allocation10] sm:$0xff]
    %v1036 = vld [vmem:[#allocation10 + $0x8] sm:$0xff]
    %v1037 = vld [vmem:[#allocation10 + $0x10] sm:$0xff]
    %v1038 = vld [vmem:[#allocation10 + $0x18] sm:$0xff]
    %v1039 = vld [vmem:[#allocation10 + $0x20] sm:$0xff]
    %v1040 = vld [vmem:[#allocation10 + $0x28] sm:$0xff]
    %v1041 = vld [vmem:[#allocation10 + $0x30] sm:$0xff]
    %v1042 = vld [vmem:[#allocation10 + $0x38] sm:$0xff]
    %v1043 = vld [vmem:[#allocation10 + $0x40] sm:$0xff]
    %v1044 = vld [vmem:[#allocation10 + $0x48] sm:$0xff]
    %v1045 = vld [vmem:[#allocation10 + $0x50] sm:$0xff]
    %v1046 = vld [vmem:[#allocation10 + $0x58] sm:$0xff]
    %v1047 = vld [vmem:[#allocation10 + $0x60] sm:$0xff]
    %v1048 = vld [vmem:[#allocation10 + $0x68] sm:$0xff]
    %v1049 = vld [vmem:[#allocation10 + $0x70] sm:$0xff]
    %v1050 = vld [vmem:[#allocation10 + $0x78] sm:$0xff]
    %v1051 = vld [vmem:[#allocation10 + $0x80] sm:$0xff]
    %v1052 = vld [vmem:[#allocation10 + $0x88] sm:$0xff]
    %v1053 = vld [vmem:[#allocation10 + $0x90] sm:$0xff]
    %v1054 = vld [vmem:[#allocation10 + $0x98] sm:$0xff]
    %v1055 = vld [vmem:[#allocation10 + $0xa0] sm:$0xff]
    %v1056 = vld [vmem:[#allocation10 + $0xa8] sm:$0xff]
    %v1057 = vld [vmem:[#allocation10 + $0xb0] sm:$0xff]
    %v1058 = vld [vmem:[#allocation10 + $0xb8] sm:$0xff]
    %v1059 = vld [vmem:[#allocation10 + $0xc0] sm:$0xff]
    %v1060 = vld [vmem:[#allocation10 + $0xc8] sm:$0xff]
    %v1061 = vld [vmem:[#allocation10 + $0xd0] sm:$0xff]
    %v1062 = vld [vmem:[#allocation10 + $0xd8] sm:$0xff]
    %v1063 = vld [vmem:[#allocation10 + $0xe0] sm:$0xff]
    %v1064 = vld [vmem:[#allocation10 + $0xe8] sm:$0xff]
    %v1065 = vld [vmem:[#allocation10 + $0xf0] sm:$0xff]
    %v1066 = vld [vmem:[#allocation10 + $0xf8] sm:$0xff]
    %v1099 = vunpack.c.l.b16 %v1035
    %v1100 = vunpack.c.h.b16 %v1035
    %v1101 = vunpack.c.l.b16 %v1036
    %v1102 = vunpack.c.h.b16 %v1036
    %v1103 = vunpack.c.l.b16 %v1037
    %v1104 = vunpack.c.h.b16 %v1037
    %v1105 = vunpack.c.l.b16 %v1038
    %v1106 = vunpack.c.h.b16 %v1038
    %v1107 = vunpack.c.l.b16 %v1039
    %v1108 = vunpack.c.h.b16 %v1039
    %v1109 = vunpack.c.l.b16 %v1040
    %v1110 = vunpack.c.h.b16 %v1040
    %v1111 = vunpack.c.l.b16 %v1041
    %v1112 = vunpack.c.h.b16 %v1041
    %v1113 = vunpack.c.l.b16 %v1042
    %v1114 = vunpack.c.h.b16 %v1042
    %v1115 = vunpack.c.l.b16 %v1043
    %v1116 = vunpack.c.h.b16 %v1043
    %v1117 = vunpack.c.l.b16 %v1044
    %v1118 = vunpack.c.h.b16 %v1044
    %v1119 = vunpack.c.l.b16 %v1045
    %v1120 = vunpack.c.h.b16 %v1045
    %v1121 = vunpack.c.l.b16 %v1046
    %v1122 = vunpack.c.h.b16 %v1046
    %v1123 = vunpack.c.l.b16 %v1047
    %v1124 = vunpack.c.h.b16 %v1047
    %v1125 = vunpack.c.l.b16 %v1048
    %v1126 = vunpack.c.h.b16 %v1048
    %v1127 = vunpack.c.l.b16 %v1049
    %v1128 = vunpack.c.h.b16 %v1049
    %v1129 = vunpack.c.l.b16 %v1050
    %v1130 = vunpack.c.h.b16 %v1050
    %v1131 = vunpack.c.l.b16 %v1051
    %v1132 = vunpack.c.h.b16 %v1051
    %v1133 = vunpack.c.l.b16 %v1052
    %v1134 = vunpack.c.h.b16 %v1052
    %v1135 = vunpack.c.l.b16 %v1053
    %v1136 = vunpack.c.h.b16 %v1053
    %v1137 = vunpack.c.l.b16 %v1054
    %v1138 = vunpack.c.h.b16 %v1054
    %v1139 = vunpack.c.l.b16 %v1055
    %v1140 = vunpack.c.h.b16 %v1055
    %v1141 = vunpack.c.l.b16 %v1056
    %v1142 = vunpack.c.h.b16 %v1056
    %v1143 = vunpack.c.l.b16 %v1057
    %v1144 = vunpack.c.h.b16 %v1057
    %v1145 = vunpack.c.l.b16 %v1058
    %v1146 = vunpack.c.h.b16 %v1058
    %v1147 = vunpack.c.l.b16 %v1059
    %v1148 = vunpack.c.h.b16 %v1059
    %v1149 = vunpack.c.l.b16 %v1060
    %v1150 = vunpack.c.h.b16 %v1060
    %v1151 = vunpack.c.l.b16 %v1061
    %v1152 = vunpack.c.h.b16 %v1061
    %v1153 = vunpack.c.l.b16 %v1062
    %v1154 = vunpack.c.h.b16 %v1062
    %v1155 = vunpack.c.l.b16 %v1063
    %v1156 = vunpack.c.h.b16 %v1063
    %v1157 = vunpack.c.l.b16 %v1064
    %v1158 = vunpack.c.h.b16 %v1064
    %v1159 = vunpack.c.l.b16 %v1065
    %v1160 = vunpack.c.h.b16 %v1065
    %v1161 = vunpack.c.l.b16 %v1066
    %v1162 = vunpack.c.h.b16 %v1066
    %v1163 = vpack.c.b16 %v1101, %v1099
    %v1164 = vpack.c.b16 %v1102, %v1100
    %v1165 = vpack.c.b16 %v1105, %v1103
    %v1166 = vpack.c.b16 %v1106, %v1104
    %v1167 = vpack.c.b16 %v1109, %v1107
    %v1168 = vpack.c.b16 %v1110, %v1108
    %v1169 = vpack.c.b16 %v1113, %v1111
    %v1170 = vpack.c.b16 %v1114, %v1112
    %v1171 = vpack.c.b16 %v1117, %v1115
    %v1172 = vpack.c.b16 %v1118, %v1116
    %v1173 = vpack.c.b16 %v1121, %v1119
    %v1174 = vpack.c.b16 %v1122, %v1120
    %v1175 = vpack.c.b16 %v1125, %v1123
    %v1176 = vpack.c.b16 %v1126, %v1124
    %v1177 = vpack.c.b16 %v1129, %v1127
    %v1178 = vpack.c.b16 %v1130, %v1128
    %v1179 = vpack.c.b16 %v1133, %v1131
    %v1180 = vpack.c.b16 %v1134, %v1132
    %v1181 = vpack.c.b16 %v1137, %v1135
    %v1182 = vpack.c.b16 %v1138, %v1136
    %v1183 = vpack.c.b16 %v1141, %v1139
    %v1184 = vpack.c.b16 %v1142, %v1140
    %v1185 = vpack.c.b16 %v1145, %v1143
    %v1186 = vpack.c.b16 %v1146, %v1144
    %v1187 = vpack.c.b16 %v1149, %v1147
    %v1188 = vpack.c.b16 %v1150, %v1148
    %v1189 = vpack.c.b16 %v1153, %v1151
    %v1190 = vpack.c.b16 %v1154, %v1152
    %v1191 = vpack.c.b16 %v1157, %v1155
    %v1192 = vpack.c.b16 %v1158, %v1156
    %v1193 = vpack.c.b16 %v1161, %v1159
    %v1194 = vpack.c.b16 %v1162, %v1160
    %1227 = vmatprep.subr.bf16.mxu0 %v1178
    %1228 = vmatpush1.bf16.msra.mxu0 %v1177
    %1229 = vmatprep.subr.bf16.mxu0 %v1176
    %1230 = vmatpush1.bf16.msra.mxu0 %v1175
    %1231 = vmatprep.subr.bf16.mxu0 %v1174
    %1232 = vmatpush1.bf16.msra.mxu0 %v1173
    %1233 = vmatprep.subr.bf16.mxu0 %v1172
    %1234 = vmatpush1.bf16.msra.mxu0 %v1171
    %1235 = vmatprep.subr.bf16.mxu0 %v1170
    %1236 = vmatpush1.bf16.msra.mxu0 %v1169
    %1237 = vmatprep.subr.bf16.mxu0 %v1168
    %1238 = vmatpush1.bf16.msra.mxu0 %v1167
    %1239 = vmatprep.subr.bf16.mxu0 %v1166
    %1240 = vmatpush1.bf16.msra.mxu0 %v1165
    %1241 = vmatprep.subr.bf16.mxu0 %v1164
    %1242 = vmatpush1.bf16.msra.mxu0 %v1163
    %1243 = vmatprep.subr.bf16.mxu0 %v1194
    %1244 = vmatpush2.bf16.msra.mxu0 %v1193
    %1245 = vmatprep.subr.bf16.mxu0 %v1192
    %1246 = vmatpush2.bf16.msra.mxu0 %v1191
    %1247 = vmatprep.subr.bf16.mxu0 %v1190
    %1248 = vmatpush2.bf16.msra.mxu0 %v1189
    %1249 = vmatprep.subr.bf16.mxu0 %v1188
    %1250 = vmatpush2.bf16.msra.mxu0 %v1187
    %1251 = vmatprep.subr.bf16.mxu0 %v1186
    %1252 = vmatpush2.bf16.msra.mxu0 %v1185
    %1253 = vmatprep.subr.bf16.mxu0 %v1184
    %1254 = vmatpush2.bf16.msra.mxu0 %v1183
    %1255 = vmatprep.subr.bf16.mxu0 %v1182
    %1256 = vmatpush2.bf16.msra.mxu0 %v1181
    %1257 = vmatprep.subr.bf16.mxu0 %v1180
    %1258 = vmatpush2.bf16.msra.mxu0 %v1179
    %1259 = vmatprep.mubr.bf16.mxu0 %v1034
    %1260 = vmatmul.mubr.bf16.gmra.mxu0 %v1033
    %v1261 = vpop.f32.mrf.mxu0
    %v1262 = vadd.f32 0.0, %v1261
    %v1263 = vpop.f32.mrf.mxu0
    %v1264 = vadd.f32 0.0, %v1263
    %v1265 = vpop.f32.mrf.mxu0
    %v1266 = vpop.f32.mrf.mxu0
    %1267 = vdwg.mxu0
    %v1268 = vpack.c.bf16 %v1262, %v1262
    %v1269 = vpack.c.bf16 %v1264, %v1264
    %v1270 = vld [vmem:[%s6] sm:$0x3]
    %v1273 = vunpack.c.l.s4 1966171168
    %v1274 = vunpack.c.0.s8 %v1273
    %v1275 = vlaneseq
    %v1276 = vshrl.u32 %v1275, 7
    %v1277 = vsub.s32 %v1274, %v1276
    %v1278 = vrot.slane %v1270, %v1277
    %v1279 = vcombine.high %v1278, %v1278
    %v1281 = vunpack.c.l.s4 1966171168
    %v1282 = vunpack.c.0.s8 %v1281
    %v1283 = vlaneseq
    %v1284 = vshrl.u32 %v1283, 7
    %v1285 = vsub.s32 %v1282, %v1284
    %v1286 = vrot.slane %v1278, %v1285
    %v1288 = vunpack.c.l.s4 1966171168
    %v1289 = vunpack.c.0.s8 %v1288
    %v1290 = vlaneseq
    %v1291 = vshrl.u32 %v1290, 7
    %v1292 = vsub.s32 %v1289, %v1291
    %v1293 = vrot.slane %v1279, %v1292
    %v1295 = vpack.i.b16 %v1286, %v1286
    %v1297 = vlaneseq
    %v1298 = vshrl.u32 %v1297, 7
    %v1299 = vsub.s32 0, %v1298
    %v1300 = vrot.slane %v1295, %v1299
    %v1302 = vpack.i.b16 %v1293, %v1293
    %v1304 = vlaneseq
    %v1305 = vshrl.u32 %v1304, 7
    %v1306 = vsub.s32 0, %v1305
    %v1307 = vrot.slane %v1302, %v1306
    %v1308 = vadd.bf16 %v1268, %v1300
    %v1309 = vadd.bf16 %v1269, %v1307
    %v1310 = vmul.bf16 %v1308, 1056980736
    %v1311 = vmul.bf16 %v1309, 1056980736
    %v1312 = vmul.bf16 %v1308, 1027030327
    %v1313 = vmul.bf16 %v1309, 1027030327
    %v1314 = vmul.bf16 %v1312, %v1308
    %v1315 = vmul.bf16 %v1313, %v1309
    %v1316 = vmul.bf16 %v1314, %v1308
    %v1317 = vmul.bf16 %v1315, %v1309
    %v1318 = vadd.bf16 %v1308, %v1316
    %v1319 = vadd.bf16 %v1309, %v1317
    %v1320 = vmul.bf16 %v1318, 1061961548
    %v1321 = vmul.bf16 %v1319, 1061961548
    %v1322 = vtanh.bf16.pop %v1320
    %v1323 = vtanh.bf16.pop %v1321
    %v1324 = vadd.bf16 %v1322, 1065369472
    %v1325 = vadd.bf16 %v1323, 1065369472
    %v1326 = vmul.bf16 %v1310, %v1324
    %v1327 = vmul.bf16 %v1311, %v1325
    %v1328 = vld [vmem:[#allocation11] sm:$0xff]
    %v1329 = vld [vmem:[#allocation11 + $0x8] sm:$0xf]
    %v1330 = vld [vmem:[#allocation11 + $0xc] sm:$0xff]
    %v1331 = vld [vmem:[#allocation11 + $0x14] sm:$0xf]
    %v1332 = vld [vmem:[#allocation11 + $0x18] sm:$0xff]
    %v1333 = vld [vmem:[#allocation11 + $0x20] sm:$0xf]
    %v1334 = vld [vmem:[#allocation11 + $0x24] sm:$0xff]
    %v1335 = vld [vmem:[#allocation11 + $0x2c] sm:$0xf]
    %v1336 = vld [vmem:[#allocation11 + $0x30] sm:$0xff]
    %v1337 = vld [vmem:[#allocation11 + $0x38] sm:$0xf]
    %v1338 = vld [vmem:[#allocation11 + $0x3c] sm:$0xff]
    %v1339 = vld [vmem:[#allocation11 + $0x44] sm:$0xf]
    %v1340 = vld [vmem:[#allocation11 + $0x48] sm:$0xff]
    %v1341 = vld [vmem:[#allocation11 + $0x50] sm:$0xf]
    %v1342 = vld [vmem:[#allocation11 + $0x54] sm:$0xff]
    %v1343 = vld [vmem:[#allocation11 + $0x5c] sm:$0xf]
    %v1344 = vld [vmem:[#allocation11 + $0x60] sm:$0xff]
    %v1345 = vld [vmem:[#allocation11 + $0x68] sm:$0xf]
    %v1346 = vld [vmem:[#allocation11 + $0x6c] sm:$0xff]
    %v1347 = vld [vmem:[#allocation11 + $0x74] sm:$0xf]
    %v1348 = vld [vmem:[#allocation11 + $0x78] sm:$0xff]
    %v1349 = vld [vmem:[#allocation11 + $0x80] sm:$0xf]
    %v1350 = vld [vmem:[#allocation11 + $0x84] sm:$0xff]
    %v1351 = vld [vmem:[#allocation11 + $0x8c] sm:$0xf]
    %v1352 = vld [vmem:[#allocation11 + $0x90] sm:$0xff]
    %v1353 = vld [vmem:[#allocation11 + $0x98] sm:$0xf]
    %v1354 = vld [vmem:[#allocation11 + $0x9c] sm:$0xff]
    %v1355 = vld [vmem:[#allocation11 + $0xa4] sm:$0xf]
    %v1356 = vld [vmem:[#allocation11 + $0xa8] sm:$0xff]
    %v1357 = vld [vmem:[#allocation11 + $0xb0] sm:$0xf]
    %v1358 = vld [vmem:[#allocation11 + $0xb4] sm:$0xff]
    %v1359 = vld [vmem:[#allocation11 + $0xbc] sm:$0xf]
    %v1360 = vld [vmem:[#allocation11 + $0xc0] sm:$0xff]
    %v1361 = vld [vmem:[#allocation11 + $0xc8] sm:$0xf]
    %v1362 = vld [vmem:[#allocation11 + $0xcc] sm:$0xff]
    %v1363 = vld [vmem:[#allocation11 + $0xd4] sm:$0xf]
    %v1364 = vld [vmem:[#allocation11 + $0xd8] sm:$0xff]
    %v1365 = vld [vmem:[#allocation11 + $0xe0] sm:$0xf]
    %v1366 = vld [vmem:[#allocation11 + $0xe4] sm:$0xff]
    %v1367 = vld [vmem:[#allocation11 + $0xec] sm:$0xf]
    %v1368 = vld [vmem:[#allocation11 + $0xf0] sm:$0xff]
    %v1369 = vld [vmem:[#allocation11 + $0xf8] sm:$0xf]
    %v1370 = vld [vmem:[#allocation11 + $0xfc] sm:$0xff]
    %v1371 = vld [vmem:[#allocation11 + $0x104] sm:$0xf]
    %v1372 = vld [vmem:[#allocation11 + $0x108] sm:$0xff]
    %v1373 = vld [vmem:[#allocation11 + $0x110] sm:$0xf]
    %v1374 = vld [vmem:[#allocation11 + $0x114] sm:$0xff]
    %v1375 = vld [vmem:[#allocation11 + $0x11c] sm:$0xf]
    %v1376 = vld [vmem:[#allocation11 + $0x120] sm:$0xff]
    %v1377 = vld [vmem:[#allocation11 + $0x128] sm:$0xf]
    %v1378 = vld [vmem:[#allocation11 + $0x12c] sm:$0xff]
    %v1379 = vld [vmem:[#allocation11 + $0x134] sm:$0xf]
    %v1380 = vld [vmem:[#allocation11 + $0x138] sm:$0xff]
    %v1381 = vld [vmem:[#allocation11 + $0x140] sm:$0xf]
    %v1382 = vld [vmem:[#allocation11 + $0x144] sm:$0xff]
    %v1383 = vld [vmem:[#allocation11 + $0x14c] sm:$0xf]
    %v1384 = vld [vmem:[#allocation11 + $0x150] sm:$0xff]
    %v1385 = vld [vmem:[#allocation11 + $0x158] sm:$0xf]
    %v1386 = vld [vmem:[#allocation11 + $0x15c] sm:$0xff]
    %v1387 = vld [vmem:[#allocation11 + $0x164] sm:$0xf]
    %v1388 = vld [vmem:[#allocation11 + $0x168] sm:$0xff]
    %v1389 = vld [vmem:[#allocation11 + $0x170] sm:$0xf]
    %v1390 = vld [vmem:[#allocation11 + $0x174] sm:$0xff]
    %v1391 = vld [vmem:[#allocation11 + $0x17c] sm:$0xf]
    %v1456 = vunpack.c.l.b16 %v1328
    %v1457 = vunpack.c.h.b16 %v1328
    %v1458 = vunpack.c.l.b16 %v1329
    %v1459 = vunpack.c.l.b16 %v1330
    %v1460 = vunpack.c.h.b16 %v1330
    %v1461 = vunpack.c.l.b16 %v1331
    %v1462 = vunpack.c.l.b16 %v1332
    %v1463 = vunpack.c.h.b16 %v1332
    %v1464 = vunpack.c.l.b16 %v1333
    %v1465 = vunpack.c.l.b16 %v1334
    %v1466 = vunpack.c.h.b16 %v1334
    %v1467 = vunpack.c.l.b16 %v1335
    %v1468 = vunpack.c.l.b16 %v1336
    %v1469 = vunpack.c.h.b16 %v1336
    %v1470 = vunpack.c.l.b16 %v1337
    %v1471 = vunpack.c.l.b16 %v1338
    %v1472 = vunpack.c.h.b16 %v1338
    %v1473 = vunpack.c.l.b16 %v1339
    %v1474 = vunpack.c.l.b16 %v1340
    %v1475 = vunpack.c.h.b16 %v1340
    %v1476 = vunpack.c.l.b16 %v1341
    %v1477 = vunpack.c.l.b16 %v1342
    %v1478 = vunpack.c.h.b16 %v1342
    %v1479 = vunpack.c.l.b16 %v1343
    %v1480 = vunpack.c.l.b16 %v1344
    %v1481 = vunpack.c.h.b16 %v1344
    %v1482 = vunpack.c.l.b16 %v1345
    %v1483 = vunpack.c.l.b16 %v1346
    %v1484 = vunpack.c.h.b16 %v1346
    %v1485 = vunpack.c.l.b16 %v1347
    %v1486 = vunpack.c.l.b16 %v1348
    %v1487 = vunpack.c.h.b16 %v1348
    %v1488 = vunpack.c.l.b16 %v1349
    %v1489 = vunpack.c.l.b16 %v1350
    %v1490 = vunpack.c.h.b16 %v1350
    %v1491 = vunpack.c.l.b16 %v1351
    %v1492 = vunpack.c.l.b16 %v1352
    %v1493 = vunpack.c.h.b16 %v1352
    %v1494 = vunpack.c.l.b16 %v1353
    %v1495 = vunpack.c.l.b16 %v1354
    %v1496 = vunpack.c.h.b16 %v1354
    %v1497 = vunpack.c.l.b16 %v1355
    %v1498 = vunpack.c.l.b16 %v1356
    %v1499 = vunpack.c.h.b16 %v1356
    %v1500 = vunpack.c.l.b16 %v1357
    %v1501 = vunpack.c.l.b16 %v1358
    %v1502 = vunpack.c.h.b16 %v1358
    %v1503 = vunpack.c.l.b16 %v1359
    %v1504 = vunpack.c.l.b16 %v1360
    %v1505 = vunpack.c.h.b16 %v1360
    %v1506 = vunpack.c.l.b16 %v1361
    %v1507 = vunpack.c.l.b16 %v1362
    %v1508 = vunpack.c.h.b16 %v1362
    %v1509 = vunpack.c.l.b16 %v1363
    %v1510 = vunpack.c.l.b16 %v1364
    %v1511 = vunpack.c.h.b16 %v1364
    %v1512 = vunpack.c.l.b16 %v1365
    %v1513 = vunpack.c.l.b16 %v1366
    %v1514 = vunpack.c.h.b16 %v1366
    %v1515 = vunpack.c.l.b16 %v1367
    %v1516 = vunpack.c.l.b16 %v1368
    %v1517 = vunpack.c.h.b16 %v1368
    %v1518 = vunpack.c.l.b16 %v1369
    %v1519 = vunpack.c.l.b16 %v1370
    %v1520 = vunpack.c.h.b16 %v1370
    %v1521 = vunpack.c.l.b16 %v1371
    %v1522 = vunpack.c.l.b16 %v1372
    %v1523 = vunpack.c.h.b16 %v1372
    %v1524 = vunpack.c.l.b16 %v1373
    %v1525 = vunpack.c.l.b16 %v1374
    %v1526 = vunpack.c.h.b16 %v1374
    %v1527 = vunpack.c.l.b16 %v1375
    %v1528 = vunpack.c.l.b16 %v1376
    %v1529 = vunpack.c.h.b16 %v1376
    %v1530 = vunpack.c.l.b16 %v1377
    %v1531 = vunpack.c.l.b16 %v1378
    %v1532 = vunpack.c.h.b16 %v1378
    %v1533 = vunpack.c.l.b16 %v1379
    %v1534 = vunpack.c.l.b16 %v1380
    %v1535 = vunpack.c.h.b16 %v1380
    %v1536 = vunpack.c.l.b16 %v1381
    %v1537 = vunpack.c.l.b16 %v1382
    %v1538 = vunpack.c.h.b16 %v1382
    %v1539 = vunpack.c.l.b16 %v1383
    %v1540 = vunpack.c.l.b16 %v1384
    %v1541 = vunpack.c.h.b16 %v1384
    %v1542 = vunpack.c.l.b16 %v1385
    %v1543 = vunpack.c.l.b16 %v1386
    %v1544 = vunpack.c.h.b16 %v1386
    %v1545 = vunpack.c.l.b16 %v1387
    %v1546 = vunpack.c.l.b16 %v1388
    %v1547 = vunpack.c.h.b16 %v1388
    %v1548 = vunpack.c.l.b16 %v1389
    %v1549 = vunpack.c.l.b16 %v1390
    %v1550 = vunpack.c.h.b16 %v1390
    %v1551 = vunpack.c.l.b16 %v1391
    %v1552 = vpack.c.b16 %v1459, %v1456
    %v1553 = vpack.c.b16 %v1460, %v1457
    %v1554 = vpack.c.b16 %v1461, %v1458
    %v1555 = vpack.c.b16 %v1465, %v1462
    %v1556 = vpack.c.b16 %v1466, %v1463
    %v1557 = vpack.c.b16 %v1467, %v1464
    %v1558 = vpack.c.b16 %v1471, %v1468
    %v1559 = vpack.c.b16 %v1472, %v1469
    %v1560 = vpack.c.b16 %v1473, %v1470
    %v1561 = vpack.c.b16 %v1477, %v1474
    %v1562 = vpack.c.b16 %v1478, %v1475
    %v1563 = vpack.c.b16 %v1479, %v1476
    %v1564 = vpack.c.b16 %v1483, %v1480
    %v1565 = vpack.c.b16 %v1484, %v1481
    %v1566 = vpack.c.b16 %v1485, %v1482
    %v1567 = vpack.c.b16 %v1489, %v1486
    %v1568 = vpack.c.b16 %v1490, %v1487
    %v1569 = vpack.c.b16 %v1491, %v1488
    %v1570 = vpack.c.b16 %v1495, %v1492
    %v1571 = vpack.c.b16 %v1496, %v1493
    %v1572 = vpack.c.b16 %v1497, %v1494
    %v1573 = vpack.c.b16 %v1501, %v1498
    %v1574 = vpack.c.b16 %v1502, %v1499
    %v1575 = vpack.c.b16 %v1503, %v1500
    %v1576 = vpack.c.b16 %v1507, %v1504
    %v1577 = vpack.c.b16 %v1508, %v1505
    %v1578 = vpack.c.b16 %v1509, %v1506
    %v1579 = vpack.c.b16 %v1513, %v1510
    %v1580 = vpack.c.b16 %v1514, %v1511
    %v1581 = vpack.c.b16 %v1515, %v1512
    %v1582 = vpack.c.b16 %v1519, %v1516
    %v1583 = vpack.c.b16 %v1520, %v1517
    %v1584 = vpack.c.b16 %v1521, %v1518
    %v1585 = vpack.c.b16 %v1525, %v1522
    %v1586 = vpack.c.b16 %v1526, %v1523
    %v1587 = vpack.c.b16 %v1527, %v1524
    %v1588 = vpack.c.b16 %v1531, %v1528
    %v1589 = vpack.c.b16 %v1532, %v1529
    %v1590 = vpack.c.b16 %v1533, %v1530
    %v1591 = vpack.c.b16 %v1537, %v1534
    %v1592 = vpack.c.b16 %v1538, %v1535
    %v1593 = vpack.c.b16 %v1539, %v1536
    %v1594 = vpack.c.b16 %v1543, %v1540
    %v1595 = vpack.c.b16 %v1544, %v1541
    %v1596 = vpack.c.b16 %v1545, %v1542
    %v1597 = vpack.c.b16 %v1549, %v1546
    %v1598 = vpack.c.b16 %v1550, %v1547
    %v1599 = vpack.c.b16 %v1551, %v1548
    %1648 = vmatprep.subr.bf16.mxu0 %v1574
    %1649 = vmatpush1.bf16.msra.mxu0 %v1573
    %1650 = vmatprep.subr.bf16.mxu0 %v1571
    %1651 = vmatpush1.bf16.msra.mxu0 %v1570
    %1652 = vmatprep.subr.bf16.mxu0 %v1568
    %1653 = vmatpush1.bf16.msra.mxu0 %v1567
    %1654 = vmatprep.subr.bf16.mxu0 %v1565
    %1655 = vmatpush1.bf16.msra.mxu0 %v1564
    %1656 = vmatprep.subr.bf16.mxu0 %v1562
    %1657 = vmatpush1.bf16.msra.mxu0 %v1561
    %1658 = vmatprep.subr.bf16.mxu0 %v1559
    %1659 = vmatpush1.bf16.msra.mxu0 %v1558
    %1660 = vmatprep.subr.bf16.mxu0 %v1556
    %1661 = vmatpush1.bf16.msra.mxu0 %v1555
    %1662 = vmatprep.subr.bf16.mxu0 %v1553
    %1663 = vmatpush1.bf16.msra.mxu0 %v1552
    %1664 = vmatprep.subr.bf16.mxu0 %v1598
    %1665 = vmatpush2.bf16.msra.mxu0 %v1597
    %1666 = vmatprep.subr.bf16.mxu0 %v1595
    %1667 = vmatpush2.bf16.msra.mxu0 %v1594
    %1668 = vmatprep.subr.bf16.mxu0 %v1592
    %1669 = vmatpush2.bf16.msra.mxu0 %v1591
    %1670 = vmatprep.subr.bf16.mxu0 %v1589
    %1671 = vmatpush2.bf16.msra.mxu0 %v1588
    %1672 = vmatprep.subr.bf16.mxu0 %v1586
    %1673 = vmatpush2.bf16.msra.mxu0 %v1585
    %1674 = vmatprep.subr.bf16.mxu0 %v1583
    %1675 = vmatpush2.bf16.msra.mxu0 %v1582
    %1676 = vmatprep.subr.bf16.mxu0 %v1580
    %1677 = vmatpush2.bf16.msra.mxu0 %v1579
    %1678 = vmatprep.subr.bf16.mxu0 %v1577
    %1679 = vmatpush2.bf16.msra.mxu0 %v1576
    %1680 = vmatprep.mubr.bf16.mxu0 %v1327
    %1681 = vmatmul.mubr.bf16.gmra.mxu0 %v1326
    %v1682 = vpop.f32.mrf.mxu0
    %v1683 = vadd.f32 0.0, %v1682
    %v1684 = vpop.f32.mrf.mxu0
    %v1685 = vadd.f32 0.0, %v1684
    %v1686 = vpop.f32.mrf.mxu0
    %v1687 = vpop.f32.mrf.mxu0
    %1688 = vdwg.mxu0
    %1689 = vmatprep.subr.bf16.mxu0 0
    %1690 = vmatpush1.bf16.msra.mxu0 %v1575
    %1691 = vmatprep.subr.bf16.mxu0 0
    %1692 = vmatpush1.bf16.msra.mxu0 %v1572
    %1693 = vmatprep.subr.bf16.mxu0 0
    %1694 = vmatpush1.bf16.msra.mxu0 %v1569
    %1695 = vmatprep.subr.bf16.mxu0 0
    %1696 = vmatpush1.bf16.msra.mxu0 %v1566
    %1697 = vmatprep.subr.bf16.mxu0 0
    %1698 = vmatpush1.bf16.msra.mxu0 %v1563
    %1699 = vmatprep.subr.bf16.mxu0 0
    %1700 = vmatpush1.bf16.msra.mxu0 %v1560
    %1701 = vmatprep.subr.bf16.mxu0 0
    %1702 = vmatpush1.bf16.msra.mxu0 %v1557
    %1703 = vmatprep.subr.bf16.mxu0 0
    %1704 = vmatpush1.bf16.msra.mxu0 %v1554
    %1705 = vmatprep.subr.bf16.mxu0 0
    %1706 = vmatpush2.bf16.msra.mxu0 %v1599
    %1707 = vmatprep.subr.bf16.mxu0 0
    %1708 = vmatpush2.bf16.msra.mxu0 %v1596
    %1709 = vmatprep.subr.bf16.mxu0 0
    %1710 = vmatpush2.bf16.msra.mxu0 %v1593
    %1711 = vmatprep.subr.bf16.mxu0 0
    %1712 = vmatpush2.bf16.msra.mxu0 %v1590
    %1713 = vmatprep.subr.bf16.mxu0 0
    %1714 = vmatpush2.bf16.msra.mxu0 %v1587
    %1715 = vmatprep.subr.bf16.mxu0 0
    %1716 = vmatpush2.bf16.msra.mxu0 %v1584
    %1717 = vmatprep.subr.bf16.mxu0 0
    %1718 = vmatpush2.bf16.msra.mxu0 %v1581
    %1719 = vmatprep.subr.bf16.mxu0 0
    %1720 = vmatpush2.bf16.msra.mxu0 %v1578
    %1721 = vmatprep.mubr.bf16.mxu0 %v1327
    %1722 = vmatmul.mubr.bf16.gmra.mxu0 %v1326
    %v1723 = vpop.f32.mrf.mxu0
    %v1724 = vadd.f32 0.0, %v1723
    %v1725 = vpop.f32.mrf.mxu0
    %v1726 = vpop.f32.mrf.mxu0
    %v1727 = vpop.f32.mrf.mxu0
    %1728 = vdwg.mxu0
    %v1729 = vpack.c.bf16 %v1683, %v1683
    %v1730 = vpack.c.bf16 %v1685, %v1685
    %v1731 = vpack.c.bf16 %v1724, %v1724
    %v1732 = vld [vmem:[%s8] sm:$0x7]
    %v1735 = vunpack.c.l.s4 1966171168
    %v1736 = vunpack.c.0.s8 %v1735
    %v1737 = vlaneseq
    %v1738 = vshrl.u32 %v1737, 7
    %v1739 = vsub.s32 %v1736, %v1738
    %v1740 = vrot.slane %v1732, %v1739
    %v1741 = vcombine.high %v1740, %v1740
    %v1743 = vunpack.c.l.s4 1966171168
    %v1744 = vunpack.c.0.s8 %v1743
    %v1745 = vlaneseq
    %v1746 = vshrl.u32 %v1745, 7
    %v1747 = vsub.s32 %v1744, %v1746
    %v1748 = vrot.slane %v1740, %v1747
    %v1750 = vunpack.c.l.s4 1966171168
    %v1751 = vunpack.c.0.s8 %v1750
    %v1752 = vlaneseq
    %v1753 = vshrl.u32 %v1752, 7
    %v1754 = vsub.s32 %v1751, %v1753
    %v1755 = vrot.slane %v1741, %v1754
    %v1756 = vcombine.high %v1748, %v1748
    %v1758 = vpack.i.b16 %v1748, %v1748
    %v1760 = vlaneseq
    %v1761 = vshrl.u32 %v1760, 7
    %v1762 = vsub.s32 0, %v1761
    %v1763 = vrot.slane %v1758, %v1762
    %v1765 = vpack.i.b16 %v1755, %v1755
    %v1767 = vlaneseq
    %v1768 = vshrl.u32 %v1767, 7
    %v1769 = vsub.s32 0, %v1768
    %v1770 = vrot.slane %v1765, %v1769
    %v1772 = vpack.i.b16 %v1756, %v1756
    %v1774 = vlaneseq
    %v1775 = vshrl.u32 %v1774, 7
    %v1776 = vsub.s32 0, %v1775
    %v1777 = vrot.slane %v1772, %v1776
    %v1778 = vadd.bf16 %v1729, %v1763
    %v1779 = vadd.bf16 %v1730, %v1770
    %v1780 = vadd.bf16 %v1731, %v1777
    %v1781 = vmul.bf16 %v1778, 1056980736
    %v1782 = vmul.bf16 %v1779, 1056980736
    %v1783 = vmul.bf16 %v1780, 1056980736
    %v1784 = vmul.bf16 %v1778, 1027030327
    %v1785 = vmul.bf16 %v1779, 1027030327
    %v1786 = vmul.bf16 %v1780, 1027030327
    %v1787 = vmul.bf16 %v1784, %v1778
    %v1788 = vmul.bf16 %v1785, %v1779
    %v1789 = vmul.bf16 %v1786, %v1780
    %v1790 = vmul.bf16 %v1787, %v1778
    %v1791 = vmul.bf16 %v1788, %v1779
    %v1792 = vmul.bf16 %v1789, %v1780
    %v1793 = vadd.bf16 %v1778, %v1790
    %v1794 = vadd.bf16 %v1779, %v1791
    %v1795 = vadd.bf16 %v1780, %v1792
    %v1796 = vmul.bf16 %v1793, 1061961548
    %v1797 = vmul.bf16 %v1794, 1061961548
    %v1798 = vmul.bf16 %v1795, 1061961548
    %v1799 = vtanh.bf16.pop %v1796
    %v1800 = vtanh.bf16.pop %v1797
    %v1801 = vtanh.bf16.pop %v1798
    %v1802 = vadd.bf16 %v1799, 1065369472
    %v1803 = vadd.bf16 %v1800, 1065369472
    %v1804 = vadd.bf16 %v1801, 1065369472
    %v1805 = vmul.bf16 %v1781, %v1802
    %v1806 = vmul.bf16 %v1782, %v1803
    %v1807 = vmul.bf16 %v1783, %v1804
    %v1808 = vld [vmem:[#allocation13] sm:$0xf]
    %v1809 = vld [vmem:[#allocation13 + $0x4] sm:$0xf]
    %v1810 = vld [vmem:[#allocation13 + $0x8] sm:$0xf]
    %v1811 = vld [vmem:[#allocation13 + $0xc] sm:$0xf]
    %v1812 = vld [vmem:[#allocation13 + $0x10] sm:$0xf]
    %v1813 = vld [vmem:[#allocation13 + $0x14] sm:$0xf]
    %v1814 = vld [vmem:[#allocation13 + $0x18] sm:$0xf]
    %v1815 = vld [vmem:[#allocation13 + $0x1c] sm:$0xf]
    %v1816 = vld [vmem:[#allocation13 + $0x20] sm:$0xf]
    %v1817 = vld [vmem:[#allocation13 + $0x24] sm:$0xf]
    %v1818 = vld [vmem:[#allocation13 + $0x28] sm:$0xf]
    %v1819 = vld [vmem:[#allocation13 + $0x2c] sm:$0xf]
    %v1820 = vld [vmem:[#allocation13 + $0x30] sm:$0xf]
    %v1821 = vld [vmem:[#allocation13 + $0x34] sm:$0xf]
    %v1822 = vld [vmem:[#allocation13 + $0x38] sm:$0xf]
    %v1823 = vld [vmem:[#allocation13 + $0x3c] sm:$0xf]
    %v1824 = vld [vmem:[#allocation13 + $0x40] sm:$0xf]
    %v1825 = vld [vmem:[#allocation13 + $0x44] sm:$0xf]
    %v1826 = vld [vmem:[#allocation13 + $0x48] sm:$0xf]
    %v1827 = vld [vmem:[#allocation13 + $0x4c] sm:$0xf]
    %v1828 = vld [vmem:[#allocation13 + $0x50] sm:$0xf]
    %v1829 = vld [vmem:[#allocation13 + $0x54] sm:$0xf]
    %v1830 = vld [vmem:[#allocation13 + $0x58] sm:$0xf]
    %v1831 = vld [vmem:[#allocation13 + $0x5c] sm:$0xf]
    %v1832 = vld [vmem:[#allocation13 + $0x60] sm:$0xf]
    %v1833 = vld [vmem:[#allocation13 + $0x64] sm:$0xf]
    %v1834 = vld [vmem:[#allocation13 + $0x68] sm:$0xf]
    %v1835 = vld [vmem:[#allocation13 + $0x6c] sm:$0xf]
    %v1836 = vld [vmem:[#allocation13 + $0x70] sm:$0xf]
    %v1837 = vld [vmem:[#allocation13 + $0x74] sm:$0xf]
    %v1838 = vld [vmem:[#allocation13 + $0x78] sm:$0xf]
    %v1839 = vld [vmem:[#allocation13 + $0x7c] sm:$0xf]
    %v1840 = vld [vmem:[#allocation13 + $0x80] sm:$0xf]
    %v1841 = vld [vmem:[#allocation13 + $0x84] sm:$0xf]
    %v1842 = vld [vmem:[#allocation13 + $0x88] sm:$0xf]
    %v1843 = vld [vmem:[#allocation13 + $0x8c] sm:$0xf]
    %v1844 = vld [vmem:[#allocation13 + $0x90] sm:$0xf]
    %v1845 = vld [vmem:[#allocation13 + $0x94] sm:$0xf]
    %v1846 = vld [vmem:[#allocation13 + $0x98] sm:$0xf]
    %v1847 = vld [vmem:[#allocation13 + $0x9c] sm:$0xf]
    %v1848 = vld [vmem:[#allocation13 + $0xa0] sm:$0xf]
    %v1849 = vld [vmem:[#allocation13 + $0xa4] sm:$0xf]
    %v1850 = vld [vmem:[#allocation13 + $0xa8] sm:$0xf]
    %v1851 = vld [vmem:[#allocation13 + $0xac] sm:$0xf]
    %v1852 = vld [vmem:[#allocation13 + $0xb0] sm:$0xf]
    %v1853 = vld [vmem:[#allocation13 + $0xb4] sm:$0xf]
    %v1854 = vld [vmem:[#allocation13 + $0xb8] sm:$0xf]
    %v1855 = vld [vmem:[#allocation13 + $0xbc] sm:$0xf]
    %v1856 = vld [vmem:[%s10] sm:$0x1]
    %v1858 = vlaneseq
    %v1859 = vshrl.u32 %v1858, 7
    %v1860 = vsub.s32 0, %v1859
    %v1861 = vrot.slane %v1856, %v1860
    %v1911 = vunpack.c.l.b16 %v1808
    %v1912 = vunpack.c.l.b16 %v1809
    %v1913 = vunpack.c.l.b16 %v1810
    %v1914 = vunpack.c.l.b16 %v1811
    %v1915 = vunpack.c.l.b16 %v1812
    %v1916 = vunpack.c.l.b16 %v1813
    %v1917 = vunpack.c.l.b16 %v1814
    %v1918 = vunpack.c.l.b16 %v1815
    %v1919 = vunpack.c.l.b16 %v1816
    %v1920 = vunpack.c.l.b16 %v1817
    %v1921 = vunpack.c.l.b16 %v1818
    %v1922 = vunpack.c.l.b16 %v1819
    %v1923 = vunpack.c.l.b16 %v1820
    %v1924 = vunpack.c.l.b16 %v1821
    %v1925 = vunpack.c.l.b16 %v1822
    %v1926 = vunpack.c.l.b16 %v1823
    %v1927 = vunpack.c.l.b16 %v1824
    %v1928 = vunpack.c.l.b16 %v1825
    %v1929 = vunpack.c.l.b16 %v1826
    %v1930 = vunpack.c.l.b16 %v1827
    %v1931 = vunpack.c.l.b16 %v1828
    %v1932 = vunpack.c.l.b16 %v1829
    %v1933 = vunpack.c.l.b16 %v1830
    %v1934 = vunpack.c.l.b16 %v1831
    %v1935 = vunpack.c.l.b16 %v1832
    %v1936 = vunpack.c.l.b16 %v1833
    %v1937 = vunpack.c.l.b16 %v1834
    %v1938 = vunpack.c.l.b16 %v1835
    %v1939 = vunpack.c.l.b16 %v1836
    %v1940 = vunpack.c.l.b16 %v1837
    %v1941 = vunpack.c.l.b16 %v1838
    %v1942 = vunpack.c.l.b16 %v1839
    %v1943 = vunpack.c.l.b16 %v1840
    %v1944 = vunpack.c.l.b16 %v1841
    %v1945 = vunpack.c.l.b16 %v1842
    %v1946 = vunpack.c.l.b16 %v1843
    %v1947 = vunpack.c.l.b16 %v1844
    %v1948 = vunpack.c.l.b16 %v1845
    %v1949 = vunpack.c.l.b16 %v1846
    %v1950 = vunpack.c.l.b16 %v1847
    %v1951 = vunpack.c.l.b16 %v1848
    %v1952 = vunpack.c.l.b16 %v1849
    %v1953 = vunpack.c.l.b16 %v1850
    %v1954 = vunpack.c.l.b16 %v1851
    %v1955 = vunpack.c.l.b16 %v1852
    %v1956 = vunpack.c.l.b16 %v1853
    %v1957 = vunpack.c.l.b16 %v1854
    %v1958 = vunpack.c.l.b16 %v1855
    %v1959 = vpack.c.b16 %v1912, %v1911
    %v1960 = vpack.c.b16 %v1914, %v1913
    %v1961 = vpack.c.b16 %v1916, %v1915
    %v1962 = vpack.c.b16 %v1918, %v1917
    %v1963 = vpack.c.b16 %v1920, %v1919
    %v1964 = vpack.c.b16 %v1922, %v1921
    %v1965 = vpack.c.b16 %v1924, %v1923
    %v1966 = vpack.c.b16 %v1926, %v1925
    %v1967 = vpack.c.b16 %v1928, %v1927
    %v1968 = vpack.c.b16 %v1930, %v1929
    %v1969 = vpack.c.b16 %v1932, %v1931
    %v1970 = vpack.c.b16 %v1934, %v1933
    %v1971 = vpack.c.b16 %v1936, %v1935
    %v1972 = vpack.c.b16 %v1938, %v1937
    %v1973 = vpack.c.b16 %v1940, %v1939
    %v1974 = vpack.c.b16 %v1942, %v1941
    %v1975 = vpack.c.b16 %v1944, %v1943
    %v1976 = vpack.c.b16 %v1946, %v1945
    %v1977 = vpack.c.b16 %v1948, %v1947
    %v1978 = vpack.c.b16 %v1950, %v1949
    %v1979 = vpack.c.b16 %v1952, %v1951
    %v1980 = vpack.c.b16 %v1954, %v1953
    %v1981 = vpack.c.b16 %v1956, %v1955
    %v1982 = vpack.c.b16 %v1958, %v1957
    %2007 = vmatprep.subr.bf16.mxu0 0
    %2008 = vmatpush1.bf16.msra.mxu0 %v1966
    %2009 = vmatprep.subr.bf16.mxu0 0
    %2010 = vmatpush1.bf16.msra.mxu0 %v1965
    %2011 = vmatprep.subr.bf16.mxu0 0
    %2012 = vmatpush1.bf16.msra.mxu0 %v1964
    %2013 = vmatprep.subr.bf16.mxu0 0
    %2014 = vmatpush1.bf16.msra.mxu0 %v1963
    %2015 = vmatprep.subr.bf16.mxu0 0
    %2016 = vmatpush1.bf16.msra.mxu0 %v1962
    %2017 = vmatprep.subr.bf16.mxu0 0
    %2018 = vmatpush1.bf16.msra.mxu0 %v1961
    %2019 = vmatprep.subr.bf16.mxu0 0
    %2020 = vmatpush1.bf16.msra.mxu0 %v1960
    %2021 = vmatprep.subr.bf16.mxu0 0
    %2022 = vmatpush1.bf16.msra.mxu0 %v1959
    %2023 = vmatprep.subr.bf16.mxu0 0
    %2024 = vmatpush2.bf16.msra.mxu0 %v1974
    %2025 = vmatprep.subr.bf16.mxu0 0
    %2026 = vmatpush2.bf16.msra.mxu0 %v1973
    %2027 = vmatprep.subr.bf16.mxu0 0
    %2028 = vmatpush2.bf16.msra.mxu0 %v1972
    %2029 = vmatprep.subr.bf16.mxu0 0
    %2030 = vmatpush2.bf16.msra.mxu0 %v1971
    %2031 = vmatprep.subr.bf16.mxu0 0
    %2032 = vmatpush2.bf16.msra.mxu0 %v1970
    %2033 = vmatprep.subr.bf16.mxu0 0
    %2034 = vmatpush2.bf16.msra.mxu0 %v1969
    %2035 = vmatprep.subr.bf16.mxu0 0
    %2036 = vmatpush2.bf16.msra.mxu0 %v1968
    %2037 = vmatprep.subr.bf16.mxu0 0
    %2038 = vmatpush2.bf16.msra.mxu0 %v1967
    %2039 = vmatprep.mubr.bf16.mxu0 %v1806
    %2040 = vmatmul.mubr.bf16.gmra.mxu0 %v1805
    %v2041 = vpop.f32.mrf.mxu0
    %v2042 = vadd.f32 %v1861, %v2041
    %v2043 = vpop.f32.mrf.mxu0
    %v2044 = vpop.f32.mrf.mxu0
    %v2045 = vpop.f32.mrf.mxu0
    %2046 = vdwg.mxu0
    %2047 = vmatprep.subr.bf16.mxu0 0
    %2048 = vmatpush1.bf16.msra.mxu0 %v1982
    %2049 = vmatprep.subr.bf16.mxu0 0
    %2050 = vmatpush1.bf16.msra.mxu0 %v1981
    %2051 = vmatprep.subr.bf16.mxu0 0
    %2052 = vmatpush1.bf16.msra.mxu0 %v1980
    %2053 = vmatprep.subr.bf16.mxu0 0
    %2054 = vmatpush1.bf16.msra.mxu0 %v1979
    %2055 = vmatprep.subr.bf16.mxu0 0
    %2056 = vmatpush1.bf16.msra.mxu0 %v1978
    %2057 = vmatprep.subr.bf16.mxu0 0
    %2058 = vmatpush1.bf16.msra.mxu0 %v1977
    %2059 = vmatprep.subr.bf16.mxu0 0
    %2060 = vmatpush1.bf16.msra.mxu0 %v1976
    %2061 = vmatprep.subr.bf16.mxu0 0
    %2062 = vmatpush1.bf16.msra.mxu0 %v1975
    %2063 = vmatprep.subr.bf16.mxu0 0
    %2064 = vmatpush2.bf16.msra.mxu0 0
    %2065 = vmatprep.subr.bf16.mxu0 0
    %2066 = vmatpush2.bf16.msra.mxu0 0
    %2067 = vmatprep.subr.bf16.mxu0 0
    %2068 = vmatpush2.bf16.msra.mxu0 0
    %2069 = vmatprep.subr.bf16.mxu0 0
    %2070 = vmatpush2.bf16.msra.mxu0 0
    %2071 = vmatprep.subr.bf16.mxu0 0
    %2072 = vmatpush2.bf16.msra.mxu0 0
    %2073 = vmatprep.subr.bf16.mxu0 0
    %2074 = vmatpush2.bf16.msra.mxu0 0
    %2075 = vmatprep.subr.bf16.mxu0 0
    %2076 = vmatpush2.bf16.msra.mxu0 0
    %2077 = vmatprep.subr.bf16.mxu0 0
    %2078 = vmatpush2.bf16.msra.mxu0 0
    %2079 = vmatprep.mubr.bf16.mxu0 0
    %2080 = vmatmul.mubr.bf16.gmra.mxu0 %v1807
    %v2081 = vpop.f32.mrf.mxu0
    %v2082 = vadd.f32 %v2042, %v2081
    %v2083 = vpop.f32.mrf.mxu0
    %v2084 = vpop.f32.mrf.mxu0
    %v2085 = vpop.f32.mrf.mxu0
    %2086 = vdwg.mxu0
    %v2087 = vlaneseq
    %v2088 = vand.u32 %v2087, 127
    %vm2089 = vcmp.eq.s32.totalorder %v2088, 16
    %v2090 = vtanh.pop %v2082
    %v2091 = vsel %vm2089, %v2090, %v2082
    %2092 = vst [vmem:[#allocation14] sm:$0xff] %v2091
    // Predicated region
    $region74: #{tpu_custom_call.1} parent=1 // pred_check
      _
    $region75: #{tpu_custom_call.1} parent=1 // pred_check_branch
      %2094 = sbr.rel (0) target = $region77
    $region76: #{tpu_custom_call.1} parent=1 // pred_region
      %s2096 = ssub.s32 128, 128
      %2097 = vsyncadd [#allocation4], %s2096
      %s2099 = sshll.u32 [#allocation14], 4
      %s2100 = int_to_ptr.vmem [resolvable:$true] %s2099
      %2102 = dma.vmem_to_hbm [thread:$0]  %s2100, 128, %s11, [#allocation4]
    $region77: #{tpu_custom_call.1} parent=1 // pred_fallthru
      _
    // Predicated region
    $region78: #{tpu_custom_call.1} parent=1 // pred_check
      _
    $region79: #{tpu_custom_call.1} parent=1 // pred_check_branch
      %2104 = sbr.rel (0) target = $region81
    $region80: #{tpu_custom_call.1} parent=1 // pred_region
      %2105 = dma.done [#allocation4], 128
    $region81: #{tpu_custom_call.1} parent=1 // pred_fallthru
      _
    %2106 = vsyncpa [#allocation3], 1
    %2107 = vsyncpa [#allocation6], 1
    %2108 = vsyncpa [#allocation9], 1
    %2109 = vsyncpa [#allocation12], 1
    %2110 = vsyncpa [#allocation4], 1

</llo_original>
